<compile_context>
chip_gen: v7x
topology: tpu7x:2x2x1
jax: 0.10.0
libtpu: 0.0.40
codegen_flags: <defaults>
</compile_context>

<pallas_src>
import jax
import jax.numpy as jnp
from jax.experimental import pallas as pl
from jax.experimental.pallas import tpu as pltpu


LANE = 128
_NEG_FILL = -1e30  # "-inf" for padded output classes (f32 epilogue only)

_VMEM_SPEC = pl.BlockSpec(memory_space=pltpu.MemorySpace.VMEM)


# ----------------------------------------------------------------------------
# Fused kernel factory (num_layers, n_pad, tm are Python-static)
# ----------------------------------------------------------------------------

def _make_fused_kernel(num_layers, n_pad, tm):
    nblocks = n_pad // tm

    def kernel(x_ref, invdeg_ref, *refs):
        nw = 2 * num_layers
        w_refs = refs[:nw]            # (W_stacked_l, b_l) * L
        adj_hbm = refs[nw]            # (Np, Np) bf16 0/1 adjacency, in HBM
        out_ref = refs[nw + 1]        # (Np, Cout_p) f32
        abuf = refs[nw + 2]           # (2, TM, Np) bf16 adj double buffer
        sem = refs[nw + 3]            # DMA sems (2,)
        hbufs = refs[nw + 4:]         # 0..2 ping-pong (Np, hid_p) bf16 buffers

        # Static work list: every (layer, row-block) pair, in dependency order.
        work = [(l, b) for l in range(num_layers) for b in range(nblocks)]
        copies = [None] * len(work)

        def start(idx):
            _, blk = work[idx]
            slot = idx % 2
            cp = pltpu.make_async_copy(
                adj_hbm.at[pl.ds(blk * tm, tm), :], abuf.at[slot], sem.at[slot])
            cp.start()
            copies[idx] = cp

        start(0)
        for idx, (li, blk) in enumerate(work):
            slot = idx % 2
            copies[idx].wait()
            if idx + 1 < len(work):
                start(idx + 1)        # prefetch next adj row tile (other slot)

            r0 = blk * tm
            if li == 0:
                h_full = x_ref[...]                       # (Np, Cin0_p) bf16
                h_rows = x_ref[pl.ds(r0, tm), :]          # (TM, Cin0_p) bf16
            else:
                src = hbufs[(li - 1) % 2]
                h_full = src[...]                         # (Np, hid_p) bf16
                h_rows = src[pl.ds(r0, tm), :]            # (TM, hid_p) bf16

            # Mean aggregation: exact 0/1 adj tile @ h (f32 acc), then f32
            # per-row 1/deg scale (not baked into bf16 adj).
            agg = jnp.dot(abuf[slot], h_full,
                          preferred_element_type=jnp.float32)
            agg = agg * invdeg_ref[pl.ds(r0, tm), :]

            # Fused projection: [agg | h] @ [Wl ; Wr] + b   (K = 2*Cin_p).
            zin = jnp.concatenate([agg.astype(jnp.bfloat16), h_rows], axis=-1)
            z = (jnp.dot(zin, w_refs[2 * li][...],
                         preferred_element_type=jnp.float32)
                 + w_refs[2 * li + 1][...])

            if li < num_layers - 1:
                # BN already folded into (W, b); dropout = identity in eval.
                hbufs[li % 2][pl.ds(r0, tm), :] = (
                    jnp.maximum(z, 0.0).astype(jnp.bfloat16))
            else:
                # Final layer: log_softmax (f32 epilogue; padded classes carry
                # a -1e30 bias so they vanish under exp after max-subtraction).
                m = jnp.max(z, axis=-1, keepdims=True)
                s = z - m
                lse = jnp.log(jnp.sum(jnp.exp(s), axis=-1, keepdims=True))
                out_ref[pl.ds(r0, tm), :] = (s - lse).astype(out_ref.dtype)

    return kernel


# ----------------------------------------------------------------------------
# Build-time prep: BN folding, padding, bf16 casts, adjacency prep (done ONCE)
# ----------------------------------------------------------------------------

def _round_up(v, m):
    return (v + m - 1) // m * m


def _pad2d(a, rows, cols, val=0.0):
    pr, pc = rows - a.shape[0], cols - a.shape[1]
    if pr == 0 and pc == 0:
        return a
    return jnp.pad(a, ((0, pr), (0, pc)), constant_values=val)


def build_sage_forward(params, adj01, eps=1e-5):
    """adj01: (N, N) exact 0/1 adjacency (self-loops included by the caller).

    Returns forward(x) -> (N, out_channels) log-probabilities.
    """
    num_layers = len(params)
    n = int(adj01.shape[0])
    n_pad = _round_up(n, LANE)
    cin0 = int(params[0]["wl"].shape[0])
    cout = int(params[-1]["wl"].shape[1])
    cin0_p = _round_up(cin0, LANE)
    cout_p = _round_up(cout, LANE)
    hid_p = _round_up(int(params[0]["wl"].shape[1]), LANE) if num_layers > 1 else 0

    # --- fold BN, stack [Wl; Wr], pad, cast (once, outside the per-call jit) --
    flat, cins_p, couts_p = [], [], []
    for li, layer in enumerate(params):
        wl, wr, bl = layer["wl"], layer["wr"], layer["bl"]
        ci, co = wl.shape
        ci_p, co_p = _round_up(ci, LANE), _round_up(co, LANE)
        if li < num_layers - 1:
            scale = layer["gamma"] * jax.lax.rsqrt(layer["var"] + eps)
            wl = wl * scale
            wr = wr * scale
            b = (bl - layer["mean"]) * scale + layer["beta"]
            bias_fill = 0.0
        else:
            b = bl
            bias_fill = _NEG_FILL
        w_stack = jnp.concatenate(
            [_pad2d(wl, ci_p, co_p), _pad2d(wr, ci_p, co_p)], axis=0
        ).astype(jnp.bfloat16)                            # (2*Cin_p, Cout_p)
        flat.append(w_stack)
        flat.append(_pad2d(b, 1, co_p, val=bias_fill).astype(jnp.float32))
        cins_p.append(ci_p)
        couts_p.append(co_p)

    # Fixed-width h scratch requires all hidden dims to pad identically.
    assert all(c == hid_p for c in cins_p[1:])
    assert all(c == hid_p for c in couts_p[:-1])

    # --- adjacency: exact 0/1 bf16 in HBM + f32 inverse degree ---------------
    adj01 = adj01.astype(jnp.float32)
    deg = jnp.sum(adj01, axis=1, keepdims=True)
    inv_deg = 1.0 / jnp.maximum(deg, 1.0)
    adj_p = _pad2d(adj01, n_pad, n_pad).astype(jnp.bfloat16)
    invdeg_p = _pad2d(inv_deg, n_pad, 1).astype(jnp.float32)

    # --- row-block tile for streaming adj from HBM ---------------------------
    tm = 128
    for cand in (512, 256, 128):
        if n_pad % cand == 0 and 2 * cand * n_pad * 2 <= (16 << 20):
            tm = cand
            break

    # --- VMEM footprint & compiler params ------------------------------------
    n_hbuf = min(num_layers - 1, 2)
    est = (n_pad * cin0_p * 2                       # x (bf16)
           + n_pad * LANE * 4                       # inv_deg ((Np,1) lane-padded)
           + sum(int(w.size) * 2 for w in flat[0::2])
           + sum(8 * int(b.shape[1]) * 4 for b in flat[1::2])
           + n_pad * cout_p * 4                     # output (f32)
           + 2 * tm * n_pad * 2                     # adj double buffer
           + n_hbuf * n_pad * hid_p * 2)            # h ping-pong buffers
    try:
        cap = int(pltpu.get_tpu_info().vmem_capacity_bytes)
    except Exception:
        cap = 64 << 20  # smallest current per-TC VMEM (v7x)
    if est + (8 << 20) > cap:
        # TODO(synk): tile h through HBM (per-layer row grid) beyond this cap.
        raise NotImplementedError(
            f"resident h footprint {est} B exceeds VMEM capacity {cap} B")
    vmem_limit = int(min(max(int(est * 1.5) + (8 << 20), 32 << 20), cap))

    flops = 0
    for ci_p, co_p in zip(cins_p, couts_p):
        flops += 2 * n_pad * n_pad * ci_p           # adj @ h
        flops += 2 * n_pad * (2 * ci_p) * co_p      # fused projection
    bytes_accessed = (num_layers * n_pad * n_pad * 2      # adj re-streamed / layer
                      + sum(int(a.size) * a.dtype.itemsize for a in flat)
                      + n_pad * cin0_p * 2 + n_pad * cout_p * 4)
    cost = pl.CostEstimate(flops=int(flops),
                           transcendentals=int(n_pad * cout_p),
                           bytes_accessed=int(bytes_accessed))

    scratch = [pltpu.VMEM((2, tm, n_pad), jnp.bfloat16),
               pltpu.SemaphoreType.DMA((2,))]
    scratch += [pltpu.VMEM((n_pad, hid_p), jnp.bfloat16) for _ in range(n_hbuf)]

    kernel = _make_fused_kernel(num_layers, n_pad, tm)
    pcall = pl.pallas_call(
        kernel,
        out_shape=jax.ShapeDtypeStruct((n_pad, cout_p), jnp.float32),
        in_specs=[_VMEM_SPEC] * (2 + 2 * num_layers)
                 + [pl.BlockSpec(memory_space=pl.ANY)],   # adjacency stays in HBM
        out_specs=_VMEM_SPEC,
        scratch_shapes=scratch,
        compiler_params=pltpu.CompilerParams(vmem_limit_bytes=vmem_limit),
        cost_estimate=cost,
    )

    flat_t = tuple(flat)

    @jax.jit
    def _forward(x, adj_arr, invdeg_arr, weights):
        x_pad = _pad2d(x, n_pad, cin0_p).astype(jnp.bfloat16)
        out = pcall(x_pad, invdeg_arr, *weights, adj_arr)
        return out[:n, :cout]

    def forward(x):
        return _forward(x, adj_p, invdeg_p, flat_t)

    return forward


# ----------------------------------------------------------------------------
# Parameter init (mirrors the module's __init__ shapes) + pure-JAX reference
# ----------------------------------------------------------------------------

def init_sage_params(key, in_channels, hidden_channels, out_channels, num_layers):
    dims = [in_channels] + [hidden_channels] * (num_layers - 1) + [out_channels]
    params = []
    for li in range(num_layers):
        cin, cout = dims[li], dims[li + 1]
        key, k1, k2, k3 = jax.random.split(key, 4)
        scale = 1.0 / jnp.sqrt(cin)
        layer = {
            "wl": jax.random.uniform(k1, (cin, cout), jnp.float32, -scale, scale),  # lin_l.weight.T
            "wr": jax.random.uniform(k2, (cin, cout), jnp.float32, -scale, scale),  # lin_r.weight.T
            "bl": jax.random.uniform(k3, (1, cout), jnp.float32, -scale, scale),    # lin_l.bias
        }
        if li < num_layers - 1:  # hidden layers have BatchNorm1d
            layer["gamma"] = jnp.ones((1, cout), jnp.float32)
            layer["beta"] = jnp.zeros((1, cout), jnp.float32)
            layer["mean"] = jnp.zeros((1, cout), jnp.float32)
            layer["var"] = jnp.ones((1, cout), jnp.float32)
        params.append(layer)
    return params


def sage_reference(params, x, adj_norm):
    """Plain-JAX f32 reference of the same forward (for validation)."""
    eps = 1e-5
    h = x
    for layer in params[:-1]:
        agg = adj_norm @ h
        z = agg @ layer["wl"] + h @ layer["wr"] + layer["bl"]
        z = (z - layer["mean"]) * jax.lax.rsqrt(layer["var"] + eps) * layer["gamma"] + layer["beta"]
        h = jnp.maximum(z, 0.0)
    last = params[-1]
    z = (adj_norm @ h) @ last["wl"] + h @ last["wr"] + last["bl"]
    return jax.nn.log_softmax(z, axis=-1)


# ----------------------------------------------------------------------------
# Main
# ----------------------------------------------------------------------------

if __name__ == "__main__":
    key = jax.random.PRNGKey(0)

    N = 128              # number of graph nodes
    in_channels = 32
    hidden_channels = 64
    out_channels = 16
    num_layers = 3
    dropout = 0.5        # unused at inference

    key, kx, ka, kp = jax.random.split(key, 4)

    # Node features (N, C_in).
    x = jax.random.normal(kx, (N, in_channels), jnp.float32)

    # Random symmetric binary adjacency with self-loops (mean aggregation).
    a = (jax.random.uniform(ka, (N, N)) < 0.3).astype(jnp.float32)
    a = jnp.maximum(a, a.T)
    a = jnp.maximum(a, jnp.eye(N, dtype=jnp.float32))
    deg = jnp.sum(a, axis=1, keepdims=True)
    adj_norm = a / jnp.maximum(deg, 1.0)   # only for the f32 reference

    params = init_sage_params(kp, in_channels, hidden_channels, out_channels, num_layers)

    forward = build_sage_forward(params, a)
    out = jax.block_until_ready(forward(x))

    assert out.shape == (N, out_channels)
    assert bool(jnp.all(jnp.isfinite(out)))
    # log_softmax rows exponentiate-sum to 1.
    assert jnp.allclose(jnp.sum(jnp.exp(out), axis=-1), 1.0, atol=1e-3)
    # Match the f32 pure-JAX reference (typical max err ~1e-2 with exact 0/1
    # bf16 adjacency + f32 1/deg post-scale; only h/x/W are bf16).
    ref = sage_reference(params, x, adj_norm)
    err = float(jnp.max(jnp.abs(out - ref)))
    assert err < 0.1, err

    print("KERNEL_OK")
</pallas_src>

<mosaic_0001>
module attributes {stable_mosaic.version = 11 : i64} {
  func.func @kernel(%arg0: memref<128x128xbf16, #tpu.memory_space<vmem>>, %arg1: memref<128x1xf32, #tpu.memory_space<vmem>>, %arg2: memref<256x128xbf16, #tpu.memory_space<vmem>>, %arg3: memref<1x128xf32, #tpu.memory_space<vmem>>, %arg4: memref<256x128xbf16, #tpu.memory_space<vmem>>, %arg5: memref<1x128xf32, #tpu.memory_space<vmem>>, %arg6: memref<256x128xbf16, #tpu.memory_space<vmem>>, %arg7: memref<1x128xf32, #tpu.memory_space<vmem>>, %arg8: memref<128x128xbf16, #tpu.memory_space<any>>, %arg9: memref<128x128xf32, #tpu.memory_space<vmem>>, %arg10: memref<2x128x128xbf16, #tpu.memory_space<vmem>>, %arg11: memref<2x!tpu.dma_semaphore, #tpu.memory_space<semaphore_mem>>, %arg12: memref<128x128xbf16, #tpu.memory_space<vmem>>, %arg13: memref<128x128xbf16, #tpu.memory_space<vmem>>) attributes {dimension_semantics = [], scalar_prefetch = 0 : i64, scratch_operands = 4 : i64, tpu.core_type = #tpu.core_type<tc>} {
    %c0_i32 = arith.constant 0 : i32
    %c0_i32_0 = arith.constant 0 : i32
    %c0_i32_1 = arith.constant 0 : i32
    %c0_i32_2 = arith.constant 0 : i32
    %0 = tpu.memref_slice %arg8[%c0_i32_1, %c0_i32_2] : memref<128x128xbf16, #tpu.memory_space<any>> -> memref<128x128xbf16, #tpu.memory_space<any>>
    %c0_i32_3 = arith.constant 0 : i32
    %c0_i32_4 = arith.constant 0 : i32
    %1 = tpu.memref_slice %arg10[%c0_i32, %c0_i32_3, %c0_i32_4] : memref<2x128x128xbf16, #tpu.memory_space<vmem>> -> memref<1x128x128xbf16, #tpu.memory_space<vmem>>
    %2 = tpu.memref_squeeze %1 : memref<1x128x128xbf16, #tpu.memory_space<vmem>> -> memref<128x128xbf16, #tpu.memory_space<vmem>>
    %3 = tpu.memref_slice %arg11[%c0_i32_0] : memref<2x!tpu.dma_semaphore, #tpu.memory_space<semaphore_mem>> -> memref<1x!tpu.dma_semaphore, #tpu.memory_space<semaphore_mem>>
    %4 = tpu.memref_squeeze %3 : memref<1x!tpu.dma_semaphore, #tpu.memory_space<semaphore_mem>> -> memref<!tpu.dma_semaphore, #tpu.memory_space<semaphore_mem>>
    tpu.enqueue_dma source(%0 : memref<128x128xbf16, #tpu.memory_space<any>>) target(%2 : memref<128x128xbf16, #tpu.memory_space<vmem>>) target_semaphore(%4 : memref<!tpu.dma_semaphore, #tpu.memory_space<semaphore_mem>>)
    %c0_i32_5 = arith.constant 0 : i32
    %c0_i32_6 = arith.constant 0 : i32
    %c0_i32_7 = arith.constant 0 : i32
    %c0_i32_8 = arith.constant 0 : i32
    %5 = tpu.memref_slice %arg8[%c0_i32_7, %c0_i32_8] : memref<128x128xbf16, #tpu.memory_space<any>> -> memref<128x128xbf16, #tpu.memory_space<any>>
    %c0_i32_9 = arith.constant 0 : i32
    %c0_i32_10 = arith.constant 0 : i32
    %6 = tpu.memref_slice %arg10[%c0_i32_5, %c0_i32_9, %c0_i32_10] : memref<2x128x128xbf16, #tpu.memory_space<vmem>> -> memref<1x128x128xbf16, #tpu.memory_space<vmem>>
    %7 = tpu.memref_squeeze %6 : memref<1x128x128xbf16, #tpu.memory_space<vmem>> -> memref<128x128xbf16, #tpu.memory_space<vmem>>
    %8 = tpu.memref_slice %arg11[%c0_i32_6] : memref<2x!tpu.dma_semaphore, #tpu.memory_space<semaphore_mem>> -> memref<1x!tpu.dma_semaphore, #tpu.memory_space<semaphore_mem>>
    %9 = tpu.memref_squeeze %8 : memref<1x!tpu.dma_semaphore, #tpu.memory_space<semaphore_mem>> -> memref<!tpu.dma_semaphore, #tpu.memory_space<semaphore_mem>>
    tpu.wait_dma2 semaphore(%9 : memref<!tpu.dma_semaphore, #tpu.memory_space<semaphore_mem>>) src(%5 : memref<128x128xbf16, #tpu.memory_space<any>>) dst(%7 : memref<128x128xbf16, #tpu.memory_space<vmem>>)
    %c1_i32 = arith.constant 1 : i32
    %c1_i32_11 = arith.constant 1 : i32
    %c0_i32_12 = arith.constant 0 : i32
    %c0_i32_13 = arith.constant 0 : i32
    %10 = tpu.memref_slice %arg8[%c0_i32_12, %c0_i32_13] : memref<128x128xbf16, #tpu.memory_space<any>> -> memref<128x128xbf16, #tpu.memory_space<any>>
    %c0_i32_14 = arith.constant 0 : i32
    %c0_i32_15 = arith.constant 0 : i32
    %11 = tpu.memref_slice %arg10[%c1_i32, %c0_i32_14, %c0_i32_15] : memref<2x128x128xbf16, #tpu.memory_space<vmem>> -> memref<1x128x128xbf16, #tpu.memory_space<vmem>>
    %12 = tpu.memref_squeeze %11 : memref<1x128x128xbf16, #tpu.memory_space<vmem>> -> memref<128x128xbf16, #tpu.memory_space<vmem>>
    %13 = tpu.memref_slice %arg11[%c1_i32_11] : memref<2x!tpu.dma_semaphore, #tpu.memory_space<semaphore_mem>> -> memref<1x!tpu.dma_semaphore, #tpu.memory_space<semaphore_mem>>
    %14 = tpu.memref_squeeze %13 : memref<1x!tpu.dma_semaphore, #tpu.memory_space<semaphore_mem>> -> memref<!tpu.dma_semaphore, #tpu.memory_space<semaphore_mem>>
    tpu.enqueue_dma source(%10 : memref<128x128xbf16, #tpu.memory_space<any>>) target(%12 : memref<128x128xbf16, #tpu.memory_space<vmem>>) target_semaphore(%14 : memref<!tpu.dma_semaphore, #tpu.memory_space<semaphore_mem>>)
    %c0 = arith.constant 0 : index
    %c0_16 = arith.constant 0 : index
    %15 = vector.load %arg0[%c0, %c0_16] : memref<128x128xbf16, #tpu.memory_space<vmem>>, vector<128x128xbf16>
    %c0_17 = arith.constant 0 : index
    %c0_18 = arith.constant 0 : index
    %16 = vector.load %arg0[%c0_17, %c0_18] : memref<128x128xbf16, #tpu.memory_space<vmem>>, vector<128x128xbf16>
    %c0_19 = arith.constant 0 : index
    %c0_20 = arith.constant 0 : index
    %c0_21 = arith.constant 0 : index
    %17 = vector.load %arg10[%c0_19, %c0_20, %c0_21] : memref<2x128x128xbf16, #tpu.memory_space<vmem>>, vector<1x128x128xbf16>
    %18 = vector.shape_cast %17 : vector<1x128x128xbf16> to vector<128x128xbf16>
    %cst = arith.constant dense<0.000000e+00> : vector<128x128xf32>
    %19 = tpu.matmul %18, %15, %cst {dimension_numbers = #tpu.dot_dimension_numbers<[1], [0], [0], [1], [0, 0, 1, 1], [], []>} : vector<128x128xbf16>, vector<128x128xbf16>, vector<128x128xf32> -> vector<128x128xf32>
    %c0_22 = arith.constant 0 : index
    %c0_23 = arith.constant 0 : index
    %20 = vector.load %arg1[%c0_22, %c0_23] : memref<128x1xf32, #tpu.memory_space<vmem>>, vector<128x1xf32>
    %21 = vector.broadcast %20 : vector<128x1xf32> to vector<128x128xf32>
    %22 = arith.mulf %19, %21 : vector<128x128xf32>
    %23 = arith.truncf %22 : vector<128x128xf32> to vector<128x128xbf16>
    %24 = tpu.concatenate %23, %16 in 1 : vector<128x128xbf16>, vector<128x128xbf16> -> vector<128x256xbf16>
    %c0_24 = arith.constant 0 : index
    %c0_25 = arith.constant 0 : index
    %25 = vector.load %arg2[%c0_24, %c0_25] : memref<256x128xbf16, #tpu.memory_space<vmem>>, vector<256x128xbf16>
    %cst_26 = arith.constant dense<0.000000e+00> : vector<128x128xf32>
    %26 = tpu.matmul %24, %25, %cst_26 {dimension_numbers = #tpu.dot_dimension_numbers<[1], [0], [0], [1], [0, 0, 1, 1], [], []>} : vector<128x256xbf16>, vector<256x128xbf16>, vector<128x128xf32> -> vector<128x128xf32>
    %c0_27 = arith.constant 0 : index
    %c0_28 = arith.constant 0 : index
    %27 = vector.load %arg3[%c0_27, %c0_28] : memref<1x128xf32, #tpu.memory_space<vmem>>, vector<1x128xf32>
    %28 = vector.broadcast %27 : vector<1x128xf32> to vector<128x128xf32>
    %29 = arith.addf %26, %28 : vector<128x128xf32>
    %cst_29 = arith.constant 0.000000e+00 : f32
    %30 = vector.broadcast %cst_29 : f32 to vector<128x128xf32>
    %31 = arith.maximumf %29, %30 : vector<128x128xf32>
    %32 = arith.truncf %31 : vector<128x128xf32> to vector<128x128xbf16>
    %c0_30 = arith.constant 0 : index
    %c0_31 = arith.constant 0 : index
    %33 = vector.load %arg12[%c0_30, %c0_31] : memref<128x128xbf16, #tpu.memory_space<vmem>>, vector<128x128xbf16>
    tpu.vector_store %arg12[%c0_30, %c0_31], %32 {strides = array<i32>} : memref<128x128xbf16, #tpu.memory_space<vmem>>, vector<128x128xbf16>,
    %c1_i32_32 = arith.constant 1 : i32
    %c1_i32_33 = arith.constant 1 : i32
    %c0_i32_34 = arith.constant 0 : i32
    %c0_i32_35 = arith.constant 0 : i32
    %34 = tpu.memref_slice %arg8[%c0_i32_34, %c0_i32_35] : memref<128x128xbf16, #tpu.memory_space<any>> -> memref<128x128xbf16, #tpu.memory_space<any>>
    %c0_i32_36 = arith.constant 0 : i32
    %c0_i32_37 = arith.constant 0 : i32
    %35 = tpu.memref_slice %arg10[%c1_i32_32, %c0_i32_36, %c0_i32_37] : memref<2x128x128xbf16, #tpu.memory_space<vmem>> -> memref<1x128x128xbf16, #tpu.memory_space<vmem>>
    %36 = tpu.memref_squeeze %35 : memref<1x128x128xbf16, #tpu.memory_space<vmem>> -> memref<128x128xbf16, #tpu.memory_space<vmem>>
    %37 = tpu.memref_slice %arg11[%c1_i32_33] : memref<2x!tpu.dma_semaphore, #tpu.memory_space<semaphore_mem>> -> memref<1x!tpu.dma_semaphore, #tpu.memory_space<semaphore_mem>>
    %38 = tpu.memref_squeeze %37 : memref<1x!tpu.dma_semaphore, #tpu.memory_space<semaphore_mem>> -> memref<!tpu.dma_semaphore, #tpu.memory_space<semaphore_mem>>
    tpu.wait_dma2 semaphore(%38 : memref<!tpu.dma_semaphore, #tpu.memory_space<semaphore_mem>>) src(%34 : memref<128x128xbf16, #tpu.memory_space<any>>) dst(%36 : memref<128x128xbf16, #tpu.memory_space<vmem>>)
    %c0_i32_38 = arith.constant 0 : i32
    %c0_i32_39 = arith.constant 0 : i32
    %c0_i32_40 = arith.constant 0 : i32
    %c0_i32_41 = arith.constant 0 : i32
    %39 = tpu.memref_slice %arg8[%c0_i32_40, %c0_i32_41] : memref<128x128xbf16, #tpu.memory_space<any>> -> memref<128x128xbf16, #tpu.memory_space<any>>
    %c0_i32_42 = arith.constant 0 : i32
    %c0_i32_43 = arith.constant 0 : i32
    %40 = tpu.memref_slice %arg10[%c0_i32_38, %c0_i32_42, %c0_i32_43] : memref<2x128x128xbf16, #tpu.memory_space<vmem>> -> memref<1x128x128xbf16, #tpu.memory_space<vmem>>
    %41 = tpu.memref_squeeze %40 : memref<1x128x128xbf16, #tpu.memory_space<vmem>> -> memref<128x128xbf16, #tpu.memory_space<vmem>>
    %42 = tpu.memref_slice %arg11[%c0_i32_39] : memref<2x!tpu.dma_semaphore, #tpu.memory_space<semaphore_mem>> -> memref<1x!tpu.dma_semaphore, #tpu.memory_space<semaphore_mem>>
    %43 = tpu.memref_squeeze %42 : memref<1x!tpu.dma_semaphore, #tpu.memory_space<semaphore_mem>> -> memref<!tpu.dma_semaphore, #tpu.memory_space<semaphore_mem>>
    tpu.enqueue_dma source(%39 : memref<128x128xbf16, #tpu.memory_space<any>>) target(%41 : memref<128x128xbf16, #tpu.memory_space<vmem>>) target_semaphore(%43 : memref<!tpu.dma_semaphore, #tpu.memory_space<semaphore_mem>>)
    %c0_44 = arith.constant 0 : index
    %c0_45 = arith.constant 0 : index
    %44 = vector.load %arg12[%c0_44, %c0_45] : memref<128x128xbf16, #tpu.memory_space<vmem>>, vector<128x128xbf16>
    %c0_46 = arith.constant 0 : index
    %c0_47 = arith.constant 0 : index
    %45 = vector.load %arg12[%c0_46, %c0_47] : memref<128x128xbf16, #tpu.memory_space<vmem>>, vector<128x128xbf16>
    %c1 = arith.constant 1 : index
    %c0_48 = arith.constant 0 : index
    %c0_49 = arith.constant 0 : index
    %46 = vector.load %arg10[%c1, %c0_48, %c0_49] : memref<2x128x128xbf16, #tpu.memory_space<vmem>>, vector<1x128x128xbf16>
    %47 = vector.shape_cast %46 : vector<1x128x128xbf16> to vector<128x128xbf16>
    %cst_50 = arith.constant dense<0.000000e+00> : vector<128x128xf32>
    %48 = tpu.matmul %47, %44, %cst_50 {dimension_numbers = #tpu.dot_dimension_numbers<[1], [0], [0], [1], [0, 0, 1, 1], [], []>} : vector<128x128xbf16>, vector<128x128xbf16>, vector<128x128xf32> -> vector<128x128xf32>
    %c0_51 = arith.constant 0 : index
    %c0_52 = arith.constant 0 : index
    %49 = vector.load %arg1[%c0_51, %c0_52] : memref<128x1xf32, #tpu.memory_space<vmem>>, vector<128x1xf32>
    %50 = vector.broadcast %49 : vector<128x1xf32> to vector<128x128xf32>
    %51 = arith.mulf %48, %50 : vector<128x128xf32>
    %52 = arith.truncf %51 : vector<128x128xf32> to vector<128x128xbf16>
    %53 = tpu.concatenate %52, %45 in 1 : vector<128x128xbf16>, vector<128x128xbf16> -> vector<128x256xbf16>
    %c0_53 = arith.constant 0 : index
    %c0_54 = arith.constant 0 : index
    %54 = vector.load %arg4[%c0_53, %c0_54] : memref<256x128xbf16, #tpu.memory_space<vmem>>, vector<256x128xbf16>
    %cst_55 = arith.constant dense<0.000000e+00> : vector<128x128xf32>
    %55 = tpu.matmul %53, %54, %cst_55 {dimension_numbers = #tpu.dot_dimension_numbers<[1], [0], [0], [1], [0, 0, 1, 1], [], []>} : vector<128x256xbf16>, vector<256x128xbf16>, vector<128x128xf32> -> vector<128x128xf32>
    %c0_56 = arith.constant 0 : index
    %c0_57 = arith.constant 0 : index
    %56 = vector.load %arg5[%c0_56, %c0_57] : memref<1x128xf32, #tpu.memory_space<vmem>>, vector<1x128xf32>
    %57 = vector.broadcast %56 : vector<1x128xf32> to vector<128x128xf32>
    %58 = arith.addf %55, %57 : vector<128x128xf32>
    %cst_58 = arith.constant 0.000000e+00 : f32
    %59 = vector.broadcast %cst_58 : f32 to vector<128x128xf32>
    %60 = arith.maximumf %58, %59 : vector<128x128xf32>
    %61 = arith.truncf %60 : vector<128x128xf32> to vector<128x128xbf16>
    %c0_59 = arith.constant 0 : index
    %c0_60 = arith.constant 0 : index
    %62 = vector.load %arg13[%c0_59, %c0_60] : memref<128x128xbf16, #tpu.memory_space<vmem>>, vector<128x128xbf16>
    tpu.vector_store %arg13[%c0_59, %c0_60], %61 {strides = array<i32>} : memref<128x128xbf16, #tpu.memory_space<vmem>>, vector<128x128xbf16>,
    %c0_i32_61 = arith.constant 0 : i32
    %c0_i32_62 = arith.constant 0 : i32
    %c0_i32_63 = arith.constant 0 : i32
    %c0_i32_64 = arith.constant 0 : i32
    %63 = tpu.memref_slice %arg8[%c0_i32_63, %c0_i32_64] : memref<128x128xbf16, #tpu.memory_space<any>> -> memref<128x128xbf16, #tpu.memory_space<any>>
    %c0_i32_65 = arith.constant 0 : i32
    %c0_i32_66 = arith.constant 0 : i32
    %64 = tpu.memref_slice %arg10[%c0_i32_61, %c0_i32_65, %c0_i32_66] : memref<2x128x128xbf16, #tpu.memory_space<vmem>> -> memref<1x128x128xbf16, #tpu.memory_space<vmem>>
    %65 = tpu.memref_squeeze %64 : memref<1x128x128xbf16, #tpu.memory_space<vmem>> -> memref<128x128xbf16, #tpu.memory_space<vmem>>
    %66 = tpu.memref_slice %arg11[%c0_i32_62] : memref<2x!tpu.dma_semaphore, #tpu.memory_space<semaphore_mem>> -> memref<1x!tpu.dma_semaphore, #tpu.memory_space<semaphore_mem>>
    %67 = tpu.memref_squeeze %66 : memref<1x!tpu.dma_semaphore, #tpu.memory_space<semaphore_mem>> -> memref<!tpu.dma_semaphore, #tpu.memory_space<semaphore_mem>>
    tpu.wait_dma2 semaphore(%67 : memref<!tpu.dma_semaphore, #tpu.memory_space<semaphore_mem>>) src(%63 : memref<128x128xbf16, #tpu.memory_space<any>>) dst(%65 : memref<128x128xbf16, #tpu.memory_space<vmem>>)
    %c0_67 = arith.constant 0 : index
    %c0_68 = arith.constant 0 : index
    %68 = vector.load %arg13[%c0_67, %c0_68] : memref<128x128xbf16, #tpu.memory_space<vmem>>, vector<128x128xbf16>
    %c0_69 = arith.constant 0 : index
    %c0_70 = arith.constant 0 : index
    %69 = vector.load %arg13[%c0_69, %c0_70] : memref<128x128xbf16, #tpu.memory_space<vmem>>, vector<128x128xbf16>
    %c0_71 = arith.constant 0 : index
    %c0_72 = arith.constant 0 : index
    %c0_73 = arith.constant 0 : index
    %70 = vector.load %arg10[%c0_71, %c0_72, %c0_73] : memref<2x128x128xbf16, #tpu.memory_space<vmem>>, vector<1x128x128xbf16>
    %71 = vector.shape_cast %70 : vector<1x128x128xbf16> to vector<128x128xbf16>
    %cst_74 = arith.constant dense<0.000000e+00> : vector<128x128xf32>
    %72 = tpu.matmul %71, %68, %cst_74 {dimension_numbers = #tpu.dot_dimension_numbers<[1], [0], [0], [1], [0, 0, 1, 1], [], []>} : vector<128x128xbf16>, vector<128x128xbf16>, vector<128x128xf32> -> vector<128x128xf32>
    %c0_75 = arith.constant 0 : index
    %c0_76 = arith.constant 0 : index
    %73 = vector.load %arg1[%c0_75, %c0_76] : memref<128x1xf32, #tpu.memory_space<vmem>>, vector<128x1xf32>
    %74 = vector.broadcast %73 : vector<128x1xf32> to vector<128x128xf32>
    %75 = arith.mulf %72, %74 : vector<128x128xf32>
    %76 = arith.truncf %75 : vector<128x128xf32> to vector<128x128xbf16>
    %77 = tpu.concatenate %76, %69 in 1 : vector<128x128xbf16>, vector<128x128xbf16> -> vector<128x256xbf16>
    %c0_77 = arith.constant 0 : index
    %c0_78 = arith.constant 0 : index
    %78 = vector.load %arg6[%c0_77, %c0_78] : memref<256x128xbf16, #tpu.memory_space<vmem>>, vector<256x128xbf16>
    %cst_79 = arith.constant dense<0.000000e+00> : vector<128x128xf32>
    %79 = tpu.matmul %77, %78, %cst_79 {dimension_numbers = #tpu.dot_dimension_numbers<[1], [0], [0], [1], [0, 0, 1, 1], [], []>} : vector<128x256xbf16>, vector<256x128xbf16>, vector<128x128xf32> -> vector<128x128xf32>
    %c0_80 = arith.constant 0 : index
    %c0_81 = arith.constant 0 : index
    %80 = vector.load %arg7[%c0_80, %c0_81] : memref<1x128xf32, #tpu.memory_space<vmem>>, vector<1x128xf32>
    %81 = vector.broadcast %80 : vector<1x128xf32> to vector<128x128xf32>
    %82 = arith.addf %79, %81 : vector<128x128xf32>
    %cst_82 = arith.constant dense<0xFF800000> : vector<128xf32>
    %83 = vector.multi_reduction <maximumf>, %82, %cst_82 [1] : vector<128x128xf32> to vector<128xf32>
    %84 = vector.shape_cast %83 : vector<128xf32> to vector<128x1xf32>
    %85 = vector.broadcast %84 : vector<128x1xf32> to vector<128x128xf32>
    %86 = arith.subf %82, %85 : vector<128x128xf32>
    %87 = math.exp %86 : vector<128x128xf32>
    %cst_83 = arith.constant dense<0.000000e+00> : vector<128xf32>
    %88 = vector.multi_reduction <add>, %87, %cst_83 [1] : vector<128x128xf32> to vector<128xf32>
    %89 = vector.shape_cast %88 : vector<128xf32> to vector<128x1xf32>
    %90 = math.log %89 : vector<128x1xf32>
    %91 = vector.broadcast %90 : vector<128x1xf32> to vector<128x128xf32>
    %92 = arith.subf %86, %91 : vector<128x128xf32>
    %c0_84 = arith.constant 0 : index
    %c0_85 = arith.constant 0 : index
    %93 = vector.load %arg9[%c0_84, %c0_85] : memref<128x128xf32, #tpu.memory_space<vmem>>, vector<128x128xf32>
    tpu.vector_store %arg9[%c0_84, %c0_85], %92 {strides = array<i32>} : memref<128x128xf32, #tpu.memory_space<vmem>>, vector<128x128xf32>,
    return
  }
}

</mosaic_0001>

<llo_original>
// kernel: _forward.1
$region0: #{_forward.1}
  #allocation0 [shape = 'u32[]', space=smem, size = 0x4, offset = 0x4, fixed_abs, tag = 'smem constant byte address 0x4 - core index']
  #allocation1 [shape = 'u32[144,128]{1,0:T(1,128)}', space=vmem, size = 0x12000, scoped, tag = 'internal scratch']
  #allocation2 [shape = 'bf16[2,128,128]{2,1,0:T(16,128)(2,1)}', space=vmem, size = 0x10000, scoped, tag = 'scratch operand']
  #allocation3 [shape = 's32[2]{0}', space=sflag, size = 0x8, scoped, tag = 'scratch operand']
  #allocation4 [shape = 'bf16[128,128]{1,0:T(16,128)(2,1)}', space=vmem, size = 0x8000, scoped, tag = 'scratch operand']
  #allocation5 [shape = 'bf16[128,128]{1,0:T(16,128)(2,1)}', space=vmem, size = 0x8000, scoped, tag = 'scratch operand']
  #allocation6 [shape = 's32[]', space=sflag, size = 0x4, offset = 0, fixed_abs, tag = 'sflag constant byte address 0x0 - dummy sync flag']
  #allocation7 [shape = 's32[]', space=sflag, size = 0x4, offset = 0, fixed_abs, tag = 'sflag constant byte address 0x0 - dummy sync flag']
  #allocation8 [shape = 'u32[]', space=smem, size = 0x4, offset = 0x44, fixed_abs, tag = 'smem constant byte address 0x44 - assertion arg 0']
  #allocation9 [shape = 'u32[]', space=smem, size = 0x4, offset = 0x48, fixed_abs, tag = 'smem constant byte address 0x48 - assertion arg 1']
  #allocation10 [shape = 's32[]', space=sflag, size = 0x4, offset = 0, fixed_abs, tag = 'sflag constant byte address 0x0 - dummy sync flag']
  #allocation11 [shape = 's32[]', space=sflag, size = 0x4, offset = 0, fixed_abs, tag = 'sflag constant byte address 0x0 - dummy sync flag']
  #allocation12 [shape = 's32[]', space=sflag, size = 0x4, offset = 0, fixed_abs, tag = 'sflag constant byte address 0x0 - dummy sync flag']
  #allocation13 [shape = 's32[]', space=sflag, size = 0x4, offset = 0, fixed_abs, tag = 'sflag constant byte address 0x0 - dummy sync flag']
  %s0 = inlined_call_operand.vmem [shape: bf16[128,128], index: 0, kind: input, shape index: {}]
  %s1 = inlined_call_operand.vmem [shape: f32[128,1], index: 1, kind: input, shape index: {}]
  %s2 = inlined_call_operand.vmem [shape: bf16[256,128], index: 2, kind: input, shape index: {}]
  %s3 = inlined_call_operand.vmem [shape: f32[1,128], index: 3, kind: input, shape index: {}]
  %s4 = inlined_call_operand.vmem [shape: bf16[256,128], index: 4, kind: input, shape index: {}]
  %s5 = inlined_call_operand.vmem [shape: f32[1,128], index: 5, kind: input, shape index: {}]
  %s6 = inlined_call_operand.vmem [shape: bf16[256,128], index: 6, kind: input, shape index: {}]
  %s7 = inlined_call_operand.vmem [shape: f32[1,128], index: 7, kind: input, shape index: {}]
  %s8 = inlined_call_operand.hbm [shape: bf16[128,128], index: 8, kind: input, shape index: {}]
  %s9 = inlined_call_operand.vmem [shape: f32[128,128], index: 9, kind: output, shape index: {}]
  %s10 = sld [smem:[#allocation0]]
  $region54: #{_forward.1} parent=0
    _
  %s12 = ssub.s32 1, %s10
  %s13 = scalar_select 0, %s12, %s10
  // Predicated region
  $region2: #{_forward.1} parent=0 // pred_check
    _
  $region3: #{_forward.1} parent=0 // pred_check_branch
    %15 = sbr.rel (0) target = $region5
  $region4: #{_forward.1} parent=0 // pred_region
    _
  $region5: #{_forward.1} parent=0 // pred_fallthru
    _
  // Predicated region
  $region6: #{_forward.1} parent=0 // pred_check
    _
  $region7: #{_forward.1} parent=0 // pred_check_branch
    %17 = sbr.rel (0) target = $region9
  $region8: #{_forward.1} parent=0 // pred_region
    _
  $region9: #{_forward.1} parent=0 // pred_fallthru
    _
  // Predicated region
  $region10: #{_forward.1} parent=0 // pred_check
    _
  $region11: #{_forward.1} parent=0 // pred_check_branch
    %19 = sbr.rel (0) target = $region13
  $region12: #{_forward.1} parent=0 // pred_region
    _
  $region13: #{_forward.1} parent=0 // pred_fallthru
    _
  // Predicated region
  $region14: #{_forward.1} parent=0 // pred_check
    _
  $region15: #{_forward.1} parent=0 // pred_check_branch
    %21 = sbr.rel (0) target = $region17
  $region16: #{_forward.1} parent=0 // pred_region
    _
  $region17: #{_forward.1} parent=0 // pred_fallthru
    _
  // Predicated region
  $region18: #{_forward.1} parent=0 // pred_check
    _
  $region19: #{_forward.1} parent=0 // pred_check_branch
    %23 = sbr.rel (0) target = $region21
  $region20: #{_forward.1} parent=0 // pred_region
    _
  $region21: #{_forward.1} parent=0 // pred_fallthru
    _
  // Predicated region
  $region22: #{_forward.1} parent=0 // pred_check
    _
  $region23: #{_forward.1} parent=0 // pred_check_branch
    %25 = sbr.rel (0) target = $region25
  $region24: #{_forward.1} parent=0 // pred_region
    _
  $region25: #{_forward.1} parent=0 // pred_fallthru
    _
  // Predicated region
  $region26: #{_forward.1} parent=0 // pred_check
    _
  $region27: #{_forward.1} parent=0 // pred_check_branch
    %27 = sbr.rel (0) target = $region29
  $region28: #{_forward.1} parent=0 // pred_region
    _
  $region29: #{_forward.1} parent=0 // pred_fallthru
    _
  // Predicated region
  $region30: #{_forward.1} parent=0 // pred_check
    _
  $region31: #{_forward.1} parent=0 // pred_check_branch
    %29 = sbr.rel (0) target = $region33
  $region32: #{_forward.1} parent=0 // pred_region
    _
  $region33: #{_forward.1} parent=0 // pred_fallthru
    _
  // Predicated region
  $region34: #{_forward.1} parent=0 // pred_check
    _
  $region35: #{_forward.1} parent=0 // pred_check_branch
    %32 = sbr.rel target = $region37
  $region36: #{_forward.1} parent=0 // pred_region
    %33 = sst [smem:[#allocation8]] [#allocation7]
    %34 = sst [smem:[#allocation9]] [#allocation6]
  $region37: #{_forward.1} parent=0 // pred_fallthru
    _
  %36 = shalt.err (0)
  %s38 = sshll.u32 [#allocation2], 4
  %s39 = int_to_ptr.vmem [resolvable:$true] %s38
  %41 = dma.hbm_to_vmem [thread:$0]  %s8, 1024, %s39, [#allocation3]
  %s42 = smul.u32 4, 16
  %s43 = smul.u32 %s42, 1
  %s44 = sshll.u32 %s43, 4
  %45 = dma.done [#allocation3], %s44
  %s46 = scalar_lea.vmem [#allocation2], 64
  %s47 = scalar_lea.sflag [#allocation3], 1
  // Predicated region
  $region38: #{_forward.1} parent=0 // pred_check
    _
  $region39: #{_forward.1} parent=0 // pred_check_branch
    %49 = sbr.rel target = $region41
  $region40: #{_forward.1} parent=0 // pred_region
    %50 = sst [smem:[#allocation8]] [#allocation11]
    %51 = sst [smem:[#allocation9]] [#allocation10]
  $region41: #{_forward.1} parent=0 // pred_fallthru
    _
  %53 = shalt.err (0)
  %s55 = sshll.u32 %s46, 4
  %s56 = int_to_ptr.vmem [resolvable:$true] %s55
  %58 = dma.hbm_to_vmem [thread:$0]  %s8, 1024, %s56, %s47
  %v59 = vld [vmem:[%s0] sm:$0xf]
  %v60 = vld [vmem:[%s0 + $0x4] sm:$0xf]
  %v61 = vld [vmem:[%s0 + $0x8] sm:$0xf]
  %v62 = vld [vmem:[%s0 + $0xc] sm:$0xf]
  %v63 = vld [vmem:[%s0 + $0x10] sm:$0xf]
  %v64 = vld [vmem:[%s0 + $0x14] sm:$0xf]
  %v65 = vld [vmem:[%s0 + $0x18] sm:$0xf]
  %v66 = vld [vmem:[%s0 + $0x1c] sm:$0xf]
  %v67 = vld [vmem:[%s0 + $0x20] sm:$0xf]
  %v68 = vld [vmem:[%s0 + $0x24] sm:$0xf]
  %v69 = vld [vmem:[%s0 + $0x28] sm:$0xf]
  %v70 = vld [vmem:[%s0 + $0x2c] sm:$0xf]
  %v71 = vld [vmem:[%s0 + $0x30] sm:$0xf]
  %v72 = vld [vmem:[%s0 + $0x34] sm:$0xf]
  %v73 = vld [vmem:[%s0 + $0x38] sm:$0xf]
  %v74 = vld [vmem:[%s0 + $0x3c] sm:$0xf]
  %v75 = vld [vmem:[#allocation2] sm:$0xff]
  %v76 = vld [vmem:[#allocation2 + $0x8] sm:$0xff]
  %v77 = vld [vmem:[#allocation2 + $0x10] sm:$0xff]
  %v78 = vld [vmem:[#allocation2 + $0x18] sm:$0xff]
  %v79 = vld [vmem:[#allocation2 + $0x20] sm:$0xff]
  %v80 = vld [vmem:[#allocation2 + $0x28] sm:$0xff]
  %v81 = vld [vmem:[#allocation2 + $0x30] sm:$0xff]
  %v82 = vld [vmem:[#allocation2 + $0x38] sm:$0xff]
  %v99 = vunpack.c.l.b16 %v59
  %v100 = vunpack.c.l.b16 %v60
  %v101 = vunpack.c.l.b16 %v61
  %v102 = vunpack.c.l.b16 %v62
  %v103 = vunpack.c.l.b16 %v63
  %v104 = vunpack.c.l.b16 %v64
  %v105 = vunpack.c.l.b16 %v65
  %v106 = vunpack.c.l.b16 %v66
  %v107 = vunpack.c.l.b16 %v67
  %v108 = vunpack.c.l.b16 %v68
  %v109 = vunpack.c.l.b16 %v69
  %v110 = vunpack.c.l.b16 %v70
  %v111 = vunpack.c.l.b16 %v71
  %v112 = vunpack.c.l.b16 %v72
  %v113 = vunpack.c.l.b16 %v73
  %v114 = vunpack.c.l.b16 %v74
  %v115 = vpack.c.b16 %v100, %v99
  %v116 = vpack.c.b16 %v102, %v101
  %v117 = vpack.c.b16 %v104, %v103
  %v118 = vpack.c.b16 %v106, %v105
  %v119 = vpack.c.b16 %v108, %v107
  %v120 = vpack.c.b16 %v110, %v109
  %v121 = vpack.c.b16 %v112, %v111
  %v122 = vpack.c.b16 %v114, %v113
  %131 = vmatprep.subr.bf16.mxu0 0
  %132 = vmatpush1.bf16.msra.mxu0 %v115
  %133 = vmatprep.subr.bf16.mxu0 0
  %134 = vmatpush1.bf16.msra.mxu0 %v116
  %135 = vmatprep.subr.bf16.mxu0 0
  %136 = vmatpush1.bf16.msra.mxu0 %v117
  %137 = vmatprep.subr.bf16.mxu0 0
  %138 = vmatpush1.bf16.msra.mxu0 %v118
  %139 = vmatprep.subr.bf16.mxu0 0
  %140 = vmatpush1.bf16.msra.mxu0 %v119
  %141 = vmatprep.subr.bf16.mxu0 0
  %142 = vmatpush1.bf16.msra.mxu0 %v120
  %143 = vmatprep.subr.bf16.mxu0 0
  %144 = vmatpush1.bf16.msra.mxu0 %v121
  %145 = vmatprep.subr.bf16.mxu0 0
  %146 = vmatpush1.bf16.msra.mxu0 %v122
  %147 = vmatprep.subr.bf16.mxu0 0
  %148 = vmatpush1.bf16.msra.mxu0 0
  %149 = vmatprep.subr.bf16.mxu0 0
  %150 = vmatpush1.bf16.msra.mxu0 0
  %151 = vmatprep.subr.bf16.mxu0 0
  %152 = vmatpush1.bf16.msra.mxu0 0
  %153 = vmatprep.subr.bf16.mxu0 0
  %154 = vmatpush1.bf16.msra.mxu0 0
  %155 = vmatprep.subr.bf16.mxu0 0
  %156 = vmatpush1.bf16.msra.mxu0 0
  %157 = vmatprep.subr.bf16.mxu0 0
  %158 = vmatpush1.bf16.msra.mxu0 0
  %159 = vmatprep.subr.bf16.mxu0 0
  %160 = vmatpush1.bf16.msra.mxu0 0
  %161 = vmatprep.subr.bf16.mxu0 0
  %162 = vmatpush1.bf16.msra.mxu0 0
  %163 = vmatprep.mubr.bf16.mxu0 0
  %164 = vmatmul.mubr.bf16.gmra.mrb[0].mxu0 %v75
  %v165 = vpop.f32.mrb[0].mxu0
  %v166 = vadd.f32 0.0, %v165
  %v167 = vpop.f32.mrb[0].mxu0
  %v168 = vpop.f32.mrb[0].mxu0
  %v169 = vadd.f32 0.0, %v168
  %v170 = vpop.f32.mrb[0].mxu0
  %171 = vmatprep.mubr.bf16.mxu0 0
  %172 = vmatmul.mubr.bf16.gmra.mrb[0].mxu0 %v76
  %v173 = vpop.f32.mrb[0].mxu0
  %v174 = vadd.f32 0.0, %v173
  %v175 = vpop.f32.mrb[0].mxu0
  %v176 = vpop.f32.mrb[0].mxu0
  %v177 = vadd.f32 0.0, %v176
  %v178 = vpop.f32.mrb[0].mxu0
  %179 = vmatprep.mubr.bf16.mxu0 0
  %180 = vmatmul.mubr.bf16.gmra.mrb[0].mxu0 %v77
  %v181 = vpop.f32.mrb[0].mxu0
  %v182 = vadd.f32 0.0, %v181
  %v183 = vpop.f32.mrb[0].mxu0
  %v184 = vpop.f32.mrb[0].mxu0
  %v185 = vadd.f32 0.0, %v184
  %v186 = vpop.f32.mrb[0].mxu0
  %187 = vmatprep.mubr.bf16.mxu0 0
  %188 = vmatmul.mubr.bf16.gmra.mrb[0].mxu0 %v78
  %v189 = vpop.f32.mrb[0].mxu0
  %v190 = vadd.f32 0.0, %v189
  %v191 = vpop.f32.mrb[0].mxu0
  %v192 = vpop.f32.mrb[0].mxu0
  %v193 = vadd.f32 0.0, %v192
  %v194 = vpop.f32.mrb[0].mxu0
  %195 = vmatprep.mubr.bf16.mxu0 0
  %196 = vmatmul.mubr.bf16.gmra.mrb[0].mxu0 %v79
  %v197 = vpop.f32.mrb[0].mxu0
  %v198 = vadd.f32 0.0, %v197
  %v199 = vpop.f32.mrb[0].mxu0
  %v200 = vpop.f32.mrb[0].mxu0
  %v201 = vadd.f32 0.0, %v200
  %v202 = vpop.f32.mrb[0].mxu0
  %203 = vmatprep.mubr.bf16.mxu0 0
  %204 = vmatmul.mubr.bf16.gmra.mrb[0].mxu0 %v80
  %v205 = vpop.f32.mrb[0].mxu0
  %v206 = vadd.f32 0.0, %v205
  %v207 = vpop.f32.mrb[0].mxu0
  %v208 = vpop.f32.mrb[0].mxu0
  %v209 = vadd.f32 0.0, %v208
  %v210 = vpop.f32.mrb[0].mxu0
  %211 = vmatprep.mubr.bf16.mxu0 0
  %212 = vmatmul.mubr.bf16.gmra.mrb[0].mxu0 %v81
  %v213 = vpop.f32.mrb[0].mxu0
  %v214 = vadd.f32 0.0, %v213
  %v215 = vpop.f32.mrb[0].mxu0
  %v216 = vpop.f32.mrb[0].mxu0
  %v217 = vadd.f32 0.0, %v216
  %v218 = vpop.f32.mrb[0].mxu0
  %219 = vmatprep.mubr.bf16.mxu0 0
  %220 = vmatmul.mubr.bf16.gmra.mrb[0].mxu0 %v82
  %v221 = vpop.f32.mrb[0].mxu0
  %v222 = vadd.f32 0.0, %v221
  %v223 = vpop.f32.mrb[0].mxu0
  %v224 = vpop.f32.mrb[0].mxu0
  %v225 = vadd.f32 0.0, %v224
  %v226 = vpop.f32.mrb[0].mxu0
  %227 = vdwg.mxu0
  %v228 = vld [vmem:[%s1] sm:$0xff]
  %v229 = vld [vmem:[%s1 + $0x8] sm:$0xff]
  %v230 = vld [vmem:[%s1 + $0x10] sm:$0xff]
  %v231 = vld [vmem:[%s1 + $0x18] sm:$0xff]
  %v232 = vld [vmem:[%s1 + $0x20] sm:$0xff]
  %v233 = vld [vmem:[%s1 + $0x28] sm:$0xff]
  %v234 = vld [vmem:[%s1 + $0x30] sm:$0xff]
  %v235 = vld [vmem:[%s1 + $0x38] sm:$0xff]
  %v236 = vld [vmem:[%s1 + $0x40] sm:$0xff]
  %v237 = vld [vmem:[%s1 + $0x48] sm:$0xff]
  %v238 = vld [vmem:[%s1 + $0x50] sm:$0xff]
  %v239 = vld [vmem:[%s1 + $0x58] sm:$0xff]
  %v240 = vld [vmem:[%s1 + $0x60] sm:$0xff]
  %v241 = vld [vmem:[%s1 + $0x68] sm:$0xff]
  %v242 = vld [vmem:[%s1 + $0x70] sm:$0xff]
  %v243 = vld [vmem:[%s1 + $0x78] sm:$0xff]
  %245 = vset.pattern.permute.xlu0 0
  %246 = vperm.xlu0 %245, %v228
  %v247 = vpop.permute.xlu0 %246
  %250 = vset.pattern.permute.xlu0 0
  %251 = vperm.xlu0 %250, %v229
  %v252 = vpop.permute.xlu0 %251
  %255 = vset.pattern.permute.xlu0 0
  %256 = vperm.xlu0 %255, %v230
  %v257 = vpop.permute.xlu0 %256
  %260 = vset.pattern.permute.xlu0 0
  %261 = vperm.xlu0 %260, %v231
  %v262 = vpop.permute.xlu0 %261
  %265 = vset.pattern.permute.xlu0 0
  %266 = vperm.xlu0 %265, %v232
  %v267 = vpop.permute.xlu0 %266
  %270 = vset.pattern.permute.xlu0 0
  %271 = vperm.xlu0 %270, %v233
  %v272 = vpop.permute.xlu0 %271
  %275 = vset.pattern.permute.xlu0 0
  %276 = vperm.xlu0 %275, %v234
  %v277 = vpop.permute.xlu0 %276
  %280 = vset.pattern.permute.xlu0 0
  %281 = vperm.xlu0 %280, %v235
  %v282 = vpop.permute.xlu0 %281
  %285 = vset.pattern.permute.xlu0 0
  %286 = vperm.xlu0 %285, %v236
  %v287 = vpop.permute.xlu0 %286
  %290 = vset.pattern.permute.xlu0 0
  %291 = vperm.xlu0 %290, %v237
  %v292 = vpop.permute.xlu0 %291
  %295 = vset.pattern.permute.xlu0 0
  %296 = vperm.xlu0 %295, %v238
  %v297 = vpop.permute.xlu0 %296
  %300 = vset.pattern.permute.xlu0 0
  %301 = vperm.xlu0 %300, %v239
  %v302 = vpop.permute.xlu0 %301
  %305 = vset.pattern.permute.xlu0 0
  %306 = vperm.xlu0 %305, %v240
  %v307 = vpop.permute.xlu0 %306
  %310 = vset.pattern.permute.xlu0 0
  %311 = vperm.xlu0 %310, %v241
  %v312 = vpop.permute.xlu0 %311
  %315 = vset.pattern.permute.xlu0 0
  %316 = vperm.xlu0 %315, %v242
  %v317 = vpop.permute.xlu0 %316
  %320 = vset.pattern.permute.xlu0 0
  %321 = vperm.xlu0 %320, %v243
  %v322 = vpop.permute.xlu0 %321
  %v324 = vmul.f32 %v166, %v247
  %v325 = vmul.f32 %v169, %v252
  %v326 = vmul.f32 %v174, %v257
  %v327 = vmul.f32 %v177, %v262
  %v328 = vmul.f32 %v182, %v267
  %v329 = vmul.f32 %v185, %v272
  %v330 = vmul.f32 %v190, %v277
  %v331 = vmul.f32 %v193, %v282
  %v332 = vmul.f32 %v198, %v287
  %v333 = vmul.f32 %v201, %v292
  %v334 = vmul.f32 %v206, %v297
  %v335 = vmul.f32 %v209, %v302
  %v336 = vmul.f32 %v214, %v307
  %v337 = vmul.f32 %v217, %v312
  %v338 = vmul.f32 %v222, %v317
  %v339 = vmul.f32 %v225, %v322
  %v340 = vpack.c.bf16 %v325, %v324
  %v341 = vpack.c.bf16 %v327, %v326
  %v342 = vpack.c.bf16 %v329, %v328
  %v343 = vpack.c.bf16 %v331, %v330
  %v344 = vpack.c.bf16 %v333, %v332
  %v345 = vpack.c.bf16 %v335, %v334
  %v346 = vpack.c.bf16 %v337, %v336
  %v347 = vpack.c.bf16 %v339, %v338
  %v348 = vld [vmem:[%s2] sm:$0xf]
  %v349 = vld [vmem:[%s2 + $0x4] sm:$0xf]
  %v350 = vld [vmem:[%s2 + $0x8] sm:$0xf]
  %v351 = vld [vmem:[%s2 + $0xc] sm:$0xf]
  %v352 = vld [vmem:[%s2 + $0x10] sm:$0xf]
  %v353 = vld [vmem:[%s2 + $0x14] sm:$0xf]
  %v354 = vld [vmem:[%s2 + $0x18] sm:$0xf]
  %v355 = vld [vmem:[%s2 + $0x1c] sm:$0xf]
  %v356 = vld [vmem:[%s2 + $0x20] sm:$0xf]
  %v357 = vld [vmem:[%s2 + $0x24] sm:$0xf]
  %v358 = vld [vmem:[%s2 + $0x28] sm:$0xf]
  %v359 = vld [vmem:[%s2 + $0x2c] sm:$0xf]
  %v360 = vld [vmem:[%s2 + $0x30] sm:$0xf]
  %v361 = vld [vmem:[%s2 + $0x34] sm:$0xf]
  %v362 = vld [vmem:[%s2 + $0x38] sm:$0xf]
  %v363 = vld [vmem:[%s2 + $0x3c] sm:$0xf]
  %v364 = vld [vmem:[%s2 + $0x40] sm:$0xf]
  %v365 = vld [vmem:[%s2 + $0x44] sm:$0xf]
  %v366 = vld [vmem:[%s2 + $0x48] sm:$0xf]
  %v367 = vld [vmem:[%s2 + $0x4c] sm:$0xf]
  %v368 = vld [vmem:[%s2 + $0x50] sm:$0xf]
  %v369 = vld [vmem:[%s2 + $0x54] sm:$0xf]
  %v370 = vld [vmem:[%s2 + $0x58] sm:$0xf]
  %v371 = vld [vmem:[%s2 + $0x5c] sm:$0xf]
  %v372 = vld [vmem:[%s2 + $0x60] sm:$0xf]
  %v373 = vld [vmem:[%s2 + $0x64] sm:$0xf]
  %v374 = vld [vmem:[%s2 + $0x68] sm:$0xf]
  %v375 = vld [vmem:[%s2 + $0x6c] sm:$0xf]
  %v376 = vld [vmem:[%s2 + $0x70] sm:$0xf]
  %v377 = vld [vmem:[%s2 + $0x74] sm:$0xf]
  %v378 = vld [vmem:[%s2 + $0x78] sm:$0xf]
  %v379 = vld [vmem:[%s2 + $0x7c] sm:$0xf]
  %v380 = vld [vmem:[%s3] sm:$0x1]
  %v382 = vlaneseq
  %v383 = vshrl.u32 %v382, 7
  %v384 = vsub.s32 0, %v383
  %v385 = vrot.slane %v380, %v384
  %v419 = vunpack.c.l.b16 %v348
  %v420 = vunpack.c.l.b16 %v349
  %v421 = vunpack.c.l.b16 %v350
  %v422 = vunpack.c.l.b16 %v351
  %v423 = vunpack.c.l.b16 %v352
  %v424 = vunpack.c.l.b16 %v353
  %v425 = vunpack.c.l.b16 %v354
  %v426 = vunpack.c.l.b16 %v355
  %v427 = vunpack.c.l.b16 %v356
  %v428 = vunpack.c.l.b16 %v357
  %v429 = vunpack.c.l.b16 %v358
  %v430 = vunpack.c.l.b16 %v359
  %v431 = vunpack.c.l.b16 %v360
  %v432 = vunpack.c.l.b16 %v361
  %v433 = vunpack.c.l.b16 %v362
  %v434 = vunpack.c.l.b16 %v363
  %v435 = vunpack.c.l.b16 %v364
  %v436 = vunpack.c.l.b16 %v365
  %v437 = vunpack.c.l.b16 %v366
  %v438 = vunpack.c.l.b16 %v367
  %v439 = vunpack.c.l.b16 %v368
  %v440 = vunpack.c.l.b16 %v369
  %v441 = vunpack.c.l.b16 %v370
  %v442 = vunpack.c.l.b16 %v371
  %v443 = vunpack.c.l.b16 %v372
  %v444 = vunpack.c.l.b16 %v373
  %v445 = vunpack.c.l.b16 %v374
  %v446 = vunpack.c.l.b16 %v375
  %v447 = vunpack.c.l.b16 %v376
  %v448 = vunpack.c.l.b16 %v377
  %v449 = vunpack.c.l.b16 %v378
  %v450 = vunpack.c.l.b16 %v379
  %v451 = vpack.c.b16 %v420, %v419
  %v452 = vpack.c.b16 %v422, %v421
  %v453 = vpack.c.b16 %v424, %v423
  %v454 = vpack.c.b16 %v426, %v425
  %v455 = vpack.c.b16 %v428, %v427
  %v456 = vpack.c.b16 %v430, %v429
  %v457 = vpack.c.b16 %v432, %v431
  %v458 = vpack.c.b16 %v434, %v433
  %v459 = vpack.c.b16 %v436, %v435
  %v460 = vpack.c.b16 %v438, %v437
  %v461 = vpack.c.b16 %v440, %v439
  %v462 = vpack.c.b16 %v442, %v441
  %v463 = vpack.c.b16 %v444, %v443
  %v464 = vpack.c.b16 %v446, %v445
  %v465 = vpack.c.b16 %v448, %v447
  %v466 = vpack.c.b16 %v450, %v449
  %483 = vmatprep.subr.bf16.mxu0 0
  %484 = vmatpush1.bf16.msra.mxu0 %v451
  %485 = vmatprep.subr.bf16.mxu0 0
  %486 = vmatpush1.bf16.msra.mxu0 %v452
  %487 = vmatprep.subr.bf16.mxu0 0
  %488 = vmatpush1.bf16.msra.mxu0 %v453
  %489 = vmatprep.subr.bf16.mxu0 0
  %490 = vmatpush1.bf16.msra.mxu0 %v454
  %491 = vmatprep.subr.bf16.mxu0 0
  %492 = vmatpush1.bf16.msra.mxu0 %v455
  %493 = vmatprep.subr.bf16.mxu0 0
  %494 = vmatpush1.bf16.msra.mxu0 %v456
  %495 = vmatprep.subr.bf16.mxu0 0
  %496 = vmatpush1.bf16.msra.mxu0 %v457
  %497 = vmatprep.subr.bf16.mxu0 0
  %498 = vmatpush1.bf16.msra.mxu0 %v458
  %499 = vmatprep.subr.bf16.mxu0 0
  %500 = vmatpush1.bf16.msra.mxu0 %v459
  %501 = vmatprep.subr.bf16.mxu0 0
  %502 = vmatpush1.bf16.msra.mxu0 %v460
  %503 = vmatprep.subr.bf16.mxu0 0
  %504 = vmatpush1.bf16.msra.mxu0 %v461
  %505 = vmatprep.subr.bf16.mxu0 0
  %506 = vmatpush1.bf16.msra.mxu0 %v462
  %507 = vmatprep.subr.bf16.mxu0 0
  %508 = vmatpush1.bf16.msra.mxu0 %v463
  %509 = vmatprep.subr.bf16.mxu0 0
  %510 = vmatpush1.bf16.msra.mxu0 %v464
  %511 = vmatprep.subr.bf16.mxu0 0
  %512 = vmatpush1.bf16.msra.mxu0 %v465
  %513 = vmatprep.subr.bf16.mxu0 0
  %514 = vmatpush1.bf16.msra.mxu0 %v466
  %515 = vmatprep.mubr.bf16.mxu0 %v115
  %516 = vmatmul.mubr.bf16.gmra.mrb[0].mxu0 %v340
  %v517 = vpop.f32.mrb[0].mxu0
  %v518 = vadd.f32 %v385, %v517
  %v519 = vpop.f32.mrb[0].mxu0
  %v520 = vpop.f32.mrb[0].mxu0
  %v521 = vadd.f32 %v385, %v520
  %v522 = vpop.f32.mrb[0].mxu0
  %523 = vmatprep.mubr.bf16.mxu0 %v116
  %524 = vmatmul.mubr.bf16.gmra.mrb[0].mxu0 %v341
  %v525 = vpop.f32.mrb[0].mxu0
  %v526 = vadd.f32 %v385, %v525
  %v527 = vpop.f32.mrb[0].mxu0
  %v528 = vpop.f32.mrb[0].mxu0
  %v529 = vadd.f32 %v385, %v528
  %v530 = vpop.f32.mrb[0].mxu0
  %531 = vmatprep.mubr.bf16.mxu0 %v117
  %532 = vmatmul.mubr.bf16.gmra.mrb[0].mxu0 %v342
  %v533 = vpop.f32.mrb[0].mxu0
  %v534 = vadd.f32 %v385, %v533
  %v535 = vpop.f32.mrb[0].mxu0
  %v536 = vpop.f32.mrb[0].mxu0
  %v537 = vadd.f32 %v385, %v536
  %v538 = vpop.f32.mrb[0].mxu0
  %539 = vmatprep.mubr.bf16.mxu0 %v118
  %540 = vmatmul.mubr.bf16.gmra.mrb[0].mxu0 %v343
  %v541 = vpop.f32.mrb[0].mxu0
  %v542 = vadd.f32 %v385, %v541
  %v543 = vpop.f32.mrb[0].mxu0
  %v544 = vpop.f32.mrb[0].mxu0
  %v545 = vadd.f32 %v385, %v544
  %v546 = vpop.f32.mrb[0].mxu0
  %547 = vmatprep.mubr.bf16.mxu0 %v119
  %548 = vmatmul.mubr.bf16.gmra.mrb[0].mxu0 %v344
  %v549 = vpop.f32.mrb[0].mxu0
  %v550 = vadd.f32 %v385, %v549
  %v551 = vpop.f32.mrb[0].mxu0
  %v552 = vpop.f32.mrb[0].mxu0
  %v553 = vadd.f32 %v385, %v552
  %v554 = vpop.f32.mrb[0].mxu0
  %555 = vmatprep.mubr.bf16.mxu0 %v120
  %556 = vmatmul.mubr.bf16.gmra.mrb[0].mxu0 %v345
  %v557 = vpop.f32.mrb[0].mxu0
  %v558 = vadd.f32 %v385, %v557
  %v559 = vpop.f32.mrb[0].mxu0
  %v560 = vpop.f32.mrb[0].mxu0
  %v561 = vadd.f32 %v385, %v560
  %v562 = vpop.f32.mrb[0].mxu0
  %563 = vmatprep.mubr.bf16.mxu0 %v121
  %564 = vmatmul.mubr.bf16.gmra.mrb[0].mxu0 %v346
  %v565 = vpop.f32.mrb[0].mxu0
  %v566 = vadd.f32 %v385, %v565
  %v567 = vpop.f32.mrb[0].mxu0
  %v568 = vpop.f32.mrb[0].mxu0
  %v569 = vadd.f32 %v385, %v568
  %v570 = vpop.f32.mrb[0].mxu0
  %571 = vmatprep.mubr.bf16.mxu0 %v122
  %572 = vmatmul.mubr.bf16.gmra.mrb[0].mxu0 %v347
  %v573 = vpop.f32.mrb[0].mxu0
  %v574 = vadd.f32 %v385, %v573
  %v575 = vpop.f32.mrb[0].mxu0
  %v576 = vpop.f32.mrb[0].mxu0
  %v577 = vadd.f32 %v385, %v576
  %v578 = vpop.f32.mrb[0].mxu0
  %579 = vdwg.mxu0
  %v580 = vmax.f32 %v518, 0.0
  %v581 = vmax.f32 %v521, 0.0
  %v582 = vmax.f32 %v526, 0.0
  %v583 = vmax.f32 %v529, 0.0
  %v584 = vmax.f32 %v534, 0.0
  %v585 = vmax.f32 %v537, 0.0
  %v586 = vmax.f32 %v542, 0.0
  %v587 = vmax.f32 %v545, 0.0
  %v588 = vmax.f32 %v550, 0.0
  %v589 = vmax.f32 %v553, 0.0
  %v590 = vmax.f32 %v558, 0.0
  %v591 = vmax.f32 %v561, 0.0
  %v592 = vmax.f32 %v566, 0.0
  %v593 = vmax.f32 %v569, 0.0
  %v594 = vmax.f32 %v574, 0.0
  %v595 = vmax.f32 %v577, 0.0
  %v596 = vpack.c.bf16 %v581, %v580
  %v597 = vpack.c.bf16 %v583, %v582
  %v598 = vpack.c.bf16 %v585, %v584
  %v599 = vpack.c.bf16 %v587, %v586
  %v600 = vpack.c.bf16 %v589, %v588
  %v601 = vpack.c.bf16 %v591, %v590
  %v602 = vpack.c.bf16 %v593, %v592
  %v603 = vpack.c.bf16 %v595, %v594
  %604 = vst [vmem:[#allocation4] sm:$0xff] %v596
  %605 = vst [vmem:[#allocation4 + $0x8] sm:$0xff] %v597
  %606 = vst [vmem:[#allocation4 + $0x10] sm:$0xff] %v598
  %607 = vst [vmem:[#allocation4 + $0x18] sm:$0xff] %v599
  %608 = vst [vmem:[#allocation4 + $0x20] sm:$0xff] %v600
  %609 = vst [vmem:[#allocation4 + $0x28] sm:$0xff] %v601
  %610 = vst [vmem:[#allocation4 + $0x30] sm:$0xff] %v602
  %611 = vst [vmem:[#allocation4 + $0x38] sm:$0xff] %v603
  %s612 = sshll.u32 %s43, 4
  %613 = dma.done %s47, %s612
  // Predicated region
  $region42: #{_forward.1} parent=0 // pred_check
    _
  $region43: #{_forward.1} parent=0 // pred_check_branch
    %615 = sbr.rel target = $region45
  $region44: #{_forward.1} parent=0 // pred_region
    %616 = sst [smem:[#allocation8]] [#allocation13]
    %617 = sst [smem:[#allocation9]] [#allocation12]
  $region45: #{_forward.1} parent=0 // pred_fallthru
    _
  %619 = shalt.err (0)
  %s621 = sshll.u32 [#allocation2], 4
  %s622 = int_to_ptr.vmem [resolvable:$true] %s621
  %624 = dma.hbm_to_vmem [thread:$0]  %s8, 1024, %s622, [#allocation3]
  %v625 = vld [vmem:[#allocation4] sm:$0xff]
  %v626 = vld [vmem:[#allocation4 + $0x8] sm:$0xff]
  %v627 = vld [vmem:[#allocation4 + $0x10] sm:$0xff]
  %v628 = vld [vmem:[#allocation4 + $0x18] sm:$0xff]
  %v629 = vld [vmem:[#allocation4 + $0x20] sm:$0xff]
  %v630 = vld [vmem:[#allocation4 + $0x28] sm:$0xff]
  %v631 = vld [vmem:[#allocation4 + $0x30] sm:$0xff]
  %v632 = vld [vmem:[#allocation4 + $0x38] sm:$0xff]
  %v633 = vld [vmem:[%s46] sm:$0xff]
  %v634 = vld [vmem:[%s46 + $0x8] sm:$0xff]
  %v635 = vld [vmem:[%s46 + $0x10] sm:$0xff]
  %v636 = vld [vmem:[%s46 + $0x18] sm:$0xff]
  %v637 = vld [vmem:[%s46 + $0x20] sm:$0xff]
  %v638 = vld [vmem:[%s46 + $0x28] sm:$0xff]
  %v639 = vld [vmem:[%s46 + $0x30] sm:$0xff]
  %v640 = vld [vmem:[%s46 + $0x38] sm:$0xff]
  %641 = vmatprep.subr.bf16.mxu0 0
  %642 = vmatpush1.bf16.msra.mxu0 %v625
  %643 = vmatprep.subr.bf16.mxu0 0
  %644 = vmatpush1.bf16.msra.mxu0 %v626
  %645 = vmatprep.subr.bf16.mxu0 0
  %646 = vmatpush1.bf16.msra.mxu0 %v627
  %647 = vmatprep.subr.bf16.mxu0 0
  %648 = vmatpush1.bf16.msra.mxu0 %v628
  %649 = vmatprep.subr.bf16.mxu0 0
  %650 = vmatpush1.bf16.msra.mxu0 %v629
  %651 = vmatprep.subr.bf16.mxu0 0
  %652 = vmatpush1.bf16.msra.mxu0 %v630
  %653 = vmatprep.subr.bf16.mxu0 0
  %654 = vmatpush1.bf16.msra.mxu0 %v631
  %655 = vmatprep.subr.bf16.mxu0 0
  %656 = vmatpush1.bf16.msra.mxu0 %v632
  %657 = vmatprep.subr.bf16.mxu0 0
  %658 = vmatpush1.bf16.msra.mxu0 0
  %659 = vmatprep.subr.bf16.mxu0 0
  %660 = vmatpush1.bf16.msra.mxu0 0
  %661 = vmatprep.subr.bf16.mxu0 0
  %662 = vmatpush1.bf16.msra.mxu0 0
  %663 = vmatprep.subr.bf16.mxu0 0
  %664 = vmatpush1.bf16.msra.mxu0 0
  %665 = vmatprep.subr.bf16.mxu0 0
  %666 = vmatpush1.bf16.msra.mxu0 0
  %667 = vmatprep.subr.bf16.mxu0 0
  %668 = vmatpush1.bf16.msra.mxu0 0
  %669 = vmatprep.subr.bf16.mxu0 0
  %670 = vmatpush1.bf16.msra.mxu0 0
  %671 = vmatprep.subr.bf16.mxu0 0
  %672 = vmatpush1.bf16.msra.mxu0 0
  %673 = vmatprep.mubr.bf16.mxu0 0
  %674 = vmatmul.mubr.bf16.gmra.mrb[0].mxu0 %v633
  %v675 = vpop.f32.mrb[0].mxu0
  %v676 = vadd.f32 0.0, %v675
  %v677 = vpop.f32.mrb[0].mxu0
  %v678 = vpop.f32.mrb[0].mxu0
  %v679 = vadd.f32 0.0, %v678
  %v680 = vpop.f32.mrb[0].mxu0
  %681 = vmatprep.mubr.bf16.mxu0 0
  %682 = vmatmul.mubr.bf16.gmra.mrb[0].mxu0 %v634
  %v683 = vpop.f32.mrb[0].mxu0
  %v684 = vadd.f32 0.0, %v683
  %v685 = vpop.f32.mrb[0].mxu0
  %v686 = vpop.f32.mrb[0].mxu0
  %v687 = vadd.f32 0.0, %v686
  %v688 = vpop.f32.mrb[0].mxu0
  %689 = vmatprep.mubr.bf16.mxu0 0
  %690 = vmatmul.mubr.bf16.gmra.mrb[0].mxu0 %v635
  %v691 = vpop.f32.mrb[0].mxu0
  %v692 = vadd.f32 0.0, %v691
  %v693 = vpop.f32.mrb[0].mxu0
  %v694 = vpop.f32.mrb[0].mxu0
  %v695 = vadd.f32 0.0, %v694
  %v696 = vpop.f32.mrb[0].mxu0
  %697 = vmatprep.mubr.bf16.mxu0 0
  %698 = vmatmul.mubr.bf16.gmra.mrb[0].mxu0 %v636
  %v699 = vpop.f32.mrb[0].mxu0
  %v700 = vadd.f32 0.0, %v699
  %v701 = vpop.f32.mrb[0].mxu0
  %v702 = vpop.f32.mrb[0].mxu0
  %v703 = vadd.f32 0.0, %v702
  %v704 = vpop.f32.mrb[0].mxu0
  %705 = vmatprep.mubr.bf16.mxu0 0
  %706 = vmatmul.mubr.bf16.gmra.mrb[0].mxu0 %v637
  %v707 = vpop.f32.mrb[0].mxu0
  %v708 = vadd.f32 0.0, %v707
  %v709 = vpop.f32.mrb[0].mxu0
  %v710 = vpop.f32.mrb[0].mxu0
  %v711 = vadd.f32 0.0, %v710
  %v712 = vpop.f32.mrb[0].mxu0
  %713 = vmatprep.mubr.bf16.mxu0 0
  %714 = vmatmul.mubr.bf16.gmra.mrb[0].mxu0 %v638
  %v715 = vpop.f32.mrb[0].mxu0
  %v716 = vadd.f32 0.0, %v715
  %v717 = vpop.f32.mrb[0].mxu0
  %v718 = vpop.f32.mrb[0].mxu0
  %v719 = vadd.f32 0.0, %v718
  %v720 = vpop.f32.mrb[0].mxu0
  %721 = vmatprep.mubr.bf16.mxu0 0
  %722 = vmatmul.mubr.bf16.gmra.mrb[0].mxu0 %v639
  %v723 = vpop.f32.mrb[0].mxu0
  %v724 = vadd.f32 0.0, %v723
  %v725 = vpop.f32.mrb[0].mxu0
  %v726 = vpop.f32.mrb[0].mxu0
  %v727 = vadd.f32 0.0, %v726
  %v728 = vpop.f32.mrb[0].mxu0
  %729 = vmatprep.mubr.bf16.mxu0 0
  %730 = vmatmul.mubr.bf16.gmra.mrb[0].mxu0 %v640
  %v731 = vpop.f32.mrb[0].mxu0
  %v732 = vadd.f32 0.0, %v731
  %v733 = vpop.f32.mrb[0].mxu0
  %v734 = vpop.f32.mrb[0].mxu0
  %v735 = vadd.f32 0.0, %v734
  %v736 = vpop.f32.mrb[0].mxu0
  %737 = vdwg.mxu0
  %v738 = vld [vmem:[%s1] sm:$0xff]
  %v739 = vld [vmem:[%s1 + $0x8] sm:$0xff]
  %v740 = vld [vmem:[%s1 + $0x10] sm:$0xff]
  %v741 = vld [vmem:[%s1 + $0x18] sm:$0xff]
  %v742 = vld [vmem:[%s1 + $0x20] sm:$0xff]
  %v743 = vld [vmem:[%s1 + $0x28] sm:$0xff]
  %v744 = vld [vmem:[%s1 + $0x30] sm:$0xff]
  %v745 = vld [vmem:[%s1 + $0x38] sm:$0xff]
  %v746 = vld [vmem:[%s1 + $0x40] sm:$0xff]
  %v747 = vld [vmem:[%s1 + $0x48] sm:$0xff]
  %v748 = vld [vmem:[%s1 + $0x50] sm:$0xff]
  %v749 = vld [vmem:[%s1 + $0x58] sm:$0xff]
  %v750 = vld [vmem:[%s1 + $0x60] sm:$0xff]
  %v751 = vld [vmem:[%s1 + $0x68] sm:$0xff]
  %v752 = vld [vmem:[%s1 + $0x70] sm:$0xff]
  %v753 = vld [vmem:[%s1 + $0x78] sm:$0xff]
  %755 = vset.pattern.permute.xlu0 0
  %756 = vperm.xlu0 %755, %v738
  %v757 = vpop.permute.xlu0 %756
  %760 = vset.pattern.permute.xlu0 0
  %761 = vperm.xlu0 %760, %v739
  %v762 = vpop.permute.xlu0 %761
  %765 = vset.pattern.permute.xlu0 0
  %766 = vperm.xlu0 %765, %v740
  %v767 = vpop.permute.xlu0 %766
  %770 = vset.pattern.permute.xlu0 0
  %771 = vperm.xlu0 %770, %v741
  %v772 = vpop.permute.xlu0 %771
  %775 = vset.pattern.permute.xlu0 0
  %776 = vperm.xlu0 %775, %v742
  %v777 = vpop.permute.xlu0 %776
  %780 = vset.pattern.permute.xlu0 0
  %781 = vperm.xlu0 %780, %v743
  %v782 = vpop.permute.xlu0 %781
  %785 = vset.pattern.permute.xlu0 0
  %786 = vperm.xlu0 %785, %v744
  %v787 = vpop.permute.xlu0 %786
  %790 = vset.pattern.permute.xlu0 0
  %791 = vperm.xlu0 %790, %v745
  %v792 = vpop.permute.xlu0 %791
  %795 = vset.pattern.permute.xlu0 0
  %796 = vperm.xlu0 %795, %v746
  %v797 = vpop.permute.xlu0 %796
  %800 = vset.pattern.permute.xlu0 0
  %801 = vperm.xlu0 %800, %v747
  %v802 = vpop.permute.xlu0 %801
  %805 = vset.pattern.permute.xlu0 0
  %806 = vperm.xlu0 %805, %v748
  %v807 = vpop.permute.xlu0 %806
  %810 = vset.pattern.permute.xlu0 0
  %811 = vperm.xlu0 %810, %v749
  %v812 = vpop.permute.xlu0 %811
  %815 = vset.pattern.permute.xlu0 0
  %816 = vperm.xlu0 %815, %v750
  %v817 = vpop.permute.xlu0 %816
  %820 = vset.pattern.permute.xlu0 0
  %821 = vperm.xlu0 %820, %v751
  %v822 = vpop.permute.xlu0 %821
  %825 = vset.pattern.permute.xlu0 0
  %826 = vperm.xlu0 %825, %v752
  %v827 = vpop.permute.xlu0 %826
  %830 = vset.pattern.permute.xlu0 0
  %831 = vperm.xlu0 %830, %v753
  %v832 = vpop.permute.xlu0 %831
  %v834 = vmul.f32 %v676, %v757
  %v835 = vmul.f32 %v679, %v762
  %v836 = vmul.f32 %v684, %v767
  %v837 = vmul.f32 %v687, %v772
  %v838 = vmul.f32 %v692, %v777
  %v839 = vmul.f32 %v695, %v782
  %v840 = vmul.f32 %v700, %v787
  %v841 = vmul.f32 %v703, %v792
  %v842 = vmul.f32 %v708, %v797
  %v843 = vmul.f32 %v711, %v802
  %v844 = vmul.f32 %v716, %v807
  %v845 = vmul.f32 %v719, %v812
  %v846 = vmul.f32 %v724, %v817
  %v847 = vmul.f32 %v727, %v822
  %v848 = vmul.f32 %v732, %v827
  %v849 = vmul.f32 %v735, %v832
  %v850 = vpack.c.bf16 %v835, %v834
  %v851 = vpack.c.bf16 %v837, %v836
  %v852 = vpack.c.bf16 %v839, %v838
  %v853 = vpack.c.bf16 %v841, %v840
  %v854 = vpack.c.bf16 %v843, %v842
  %v855 = vpack.c.bf16 %v845, %v844
  %v856 = vpack.c.bf16 %v847, %v846
  %v857 = vpack.c.bf16 %v849, %v848
  %v858 = vld [vmem:[%s4] sm:$0xf]
  %v859 = vld [vmem:[%s4 + $0x4] sm:$0xf]
  %v860 = vld [vmem:[%s4 + $0x8] sm:$0xf]
  %v861 = vld [vmem:[%s4 + $0xc] sm:$0xf]
  %v862 = vld [vmem:[%s4 + $0x10] sm:$0xf]
  %v863 = vld [vmem:[%s4 + $0x14] sm:$0xf]
  %v864 = vld [vmem:[%s4 + $0x18] sm:$0xf]
  %v865 = vld [vmem:[%s4 + $0x1c] sm:$0xf]
  %v866 = vld [vmem:[%s4 + $0x20] sm:$0xf]
  %v867 = vld [vmem:[%s4 + $0x24] sm:$0xf]
  %v868 = vld [vmem:[%s4 + $0x28] sm:$0xf]
  %v869 = vld [vmem:[%s4 + $0x2c] sm:$0xf]
  %v870 = vld [vmem:[%s4 + $0x30] sm:$0xf]
  %v871 = vld [vmem:[%s4 + $0x34] sm:$0xf]
  %v872 = vld [vmem:[%s4 + $0x38] sm:$0xf]
  %v873 = vld [vmem:[%s4 + $0x3c] sm:$0xf]
  %v874 = vld [vmem:[%s4 + $0x40] sm:$0xf]
  %v875 = vld [vmem:[%s4 + $0x44] sm:$0xf]
  %v876 = vld [vmem:[%s4 + $0x48] sm:$0xf]
  %v877 = vld [vmem:[%s4 + $0x4c] sm:$0xf]
  %v878 = vld [vmem:[%s4 + $0x50] sm:$0xf]
  %v879 = vld [vmem:[%s4 + $0x54] sm:$0xf]
  %v880 = vld [vmem:[%s4 + $0x58] sm:$0xf]
  %v881 = vld [vmem:[%s4 + $0x5c] sm:$0xf]
  %v882 = vld [vmem:[%s4 + $0x60] sm:$0xf]
  %v883 = vld [vmem:[%s4 + $0x64] sm:$0xf]
  %v884 = vld [vmem:[%s4 + $0x68] sm:$0xf]
  %v885 = vld [vmem:[%s4 + $0x6c] sm:$0xf]
  %v886 = vld [vmem:[%s4 + $0x70] sm:$0xf]
  %v887 = vld [vmem:[%s4 + $0x74] sm:$0xf]
  %v888 = vld [vmem:[%s4 + $0x78] sm:$0xf]
  %v889 = vld [vmem:[%s4 + $0x7c] sm:$0xf]
  %v890 = vld [vmem:[%s5] sm:$0x1]
  %v892 = vlaneseq
  %v893 = vshrl.u32 %v892, 7
  %v894 = vsub.s32 0, %v893
  %v895 = vrot.slane %v890, %v894
  %v929 = vunpack.c.l.b16 %v858
  %v930 = vunpack.c.l.b16 %v859
  %v931 = vunpack.c.l.b16 %v860
  %v932 = vunpack.c.l.b16 %v861
  %v933 = vunpack.c.l.b16 %v862
  %v934 = vunpack.c.l.b16 %v863
  %v935 = vunpack.c.l.b16 %v864
  %v936 = vunpack.c.l.b16 %v865
  %v937 = vunpack.c.l.b16 %v866
  %v938 = vunpack.c.l.b16 %v867
  %v939 = vunpack.c.l.b16 %v868
  %v940 = vunpack.c.l.b16 %v869
  %v941 = vunpack.c.l.b16 %v870
  %v942 = vunpack.c.l.b16 %v871
  %v943 = vunpack.c.l.b16 %v872
  %v944 = vunpack.c.l.b16 %v873
  %v945 = vunpack.c.l.b16 %v874
  %v946 = vunpack.c.l.b16 %v875
  %v947 = vunpack.c.l.b16 %v876
  %v948 = vunpack.c.l.b16 %v877
  %v949 = vunpack.c.l.b16 %v878
  %v950 = vunpack.c.l.b16 %v879
  %v951 = vunpack.c.l.b16 %v880
  %v952 = vunpack.c.l.b16 %v881
  %v953 = vunpack.c.l.b16 %v882
  %v954 = vunpack.c.l.b16 %v883
  %v955 = vunpack.c.l.b16 %v884
  %v956 = vunpack.c.l.b16 %v885
  %v957 = vunpack.c.l.b16 %v886
  %v958 = vunpack.c.l.b16 %v887
  %v959 = vunpack.c.l.b16 %v888
  %v960 = vunpack.c.l.b16 %v889
  %v961 = vpack.c.b16 %v930, %v929
  %v962 = vpack.c.b16 %v932, %v931
  %v963 = vpack.c.b16 %v934, %v933
  %v964 = vpack.c.b16 %v936, %v935
  %v965 = vpack.c.b16 %v938, %v937
  %v966 = vpack.c.b16 %v940, %v939
  %v967 = vpack.c.b16 %v942, %v941
  %v968 = vpack.c.b16 %v944, %v943
  %v969 = vpack.c.b16 %v946, %v945
  %v970 = vpack.c.b16 %v948, %v947
  %v971 = vpack.c.b16 %v950, %v949
  %v972 = vpack.c.b16 %v952, %v951
  %v973 = vpack.c.b16 %v954, %v953
  %v974 = vpack.c.b16 %v956, %v955
  %v975 = vpack.c.b16 %v958, %v957
  %v976 = vpack.c.b16 %v960, %v959
  %993 = vmatprep.subr.bf16.mxu0 0
  %994 = vmatpush1.bf16.msra.mxu0 %v961
  %995 = vmatprep.subr.bf16.mxu0 0
  %996 = vmatpush1.bf16.msra.mxu0 %v962
  %997 = vmatprep.subr.bf16.mxu0 0
  %998 = vmatpush1.bf16.msra.mxu0 %v963
  %999 = vmatprep.subr.bf16.mxu0 0
  %1000 = vmatpush1.bf16.msra.mxu0 %v964
  %1001 = vmatprep.subr.bf16.mxu0 0
  %1002 = vmatpush1.bf16.msra.mxu0 %v965
  %1003 = vmatprep.subr.bf16.mxu0 0
  %1004 = vmatpush1.bf16.msra.mxu0 %v966
  %1005 = vmatprep.subr.bf16.mxu0 0
  %1006 = vmatpush1.bf16.msra.mxu0 %v967
  %1007 = vmatprep.subr.bf16.mxu0 0
  %1008 = vmatpush1.bf16.msra.mxu0 %v968
  %1009 = vmatprep.subr.bf16.mxu0 0
  %1010 = vmatpush1.bf16.msra.mxu0 %v969
  %1011 = vmatprep.subr.bf16.mxu0 0
  %1012 = vmatpush1.bf16.msra.mxu0 %v970
  %1013 = vmatprep.subr.bf16.mxu0 0
  %1014 = vmatpush1.bf16.msra.mxu0 %v971
  %1015 = vmatprep.subr.bf16.mxu0 0
  %1016 = vmatpush1.bf16.msra.mxu0 %v972
  %1017 = vmatprep.subr.bf16.mxu0 0
  %1018 = vmatpush1.bf16.msra.mxu0 %v973
  %1019 = vmatprep.subr.bf16.mxu0 0
  %1020 = vmatpush1.bf16.msra.mxu0 %v974
  %1021 = vmatprep.subr.bf16.mxu0 0
  %1022 = vmatpush1.bf16.msra.mxu0 %v975
  %1023 = vmatprep.subr.bf16.mxu0 0
  %1024 = vmatpush1.bf16.msra.mxu0 %v976
  %1025 = vmatprep.mubr.bf16.mxu0 %v625
  %1026 = vmatmul.mubr.bf16.gmra.mrb[0].mxu0 %v850
  %v1027 = vpop.f32.mrb[0].mxu0
  %v1028 = vadd.f32 %v895, %v1027
  %v1029 = vpop.f32.mrb[0].mxu0
  %v1030 = vpop.f32.mrb[0].mxu0
  %v1031 = vadd.f32 %v895, %v1030
  %v1032 = vpop.f32.mrb[0].mxu0
  %1033 = vmatprep.mubr.bf16.mxu0 %v626
  %1034 = vmatmul.mubr.bf16.gmra.mrb[0].mxu0 %v851
  %v1035 = vpop.f32.mrb[0].mxu0
  %v1036 = vadd.f32 %v895, %v1035
  %v1037 = vpop.f32.mrb[0].mxu0
  %v1038 = vpop.f32.mrb[0].mxu0
  %v1039 = vadd.f32 %v895, %v1038
  %v1040 = vpop.f32.mrb[0].mxu0
  %1041 = vmatprep.mubr.bf16.mxu0 %v627
  %1042 = vmatmul.mubr.bf16.gmra.mrb[0].mxu0 %v852
  %v1043 = vpop.f32.mrb[0].mxu0
  %v1044 = vadd.f32 %v895, %v1043
  %v1045 = vpop.f32.mrb[0].mxu0
  %v1046 = vpop.f32.mrb[0].mxu0
  %v1047 = vadd.f32 %v895, %v1046
  %v1048 = vpop.f32.mrb[0].mxu0
  %1049 = vmatprep.mubr.bf16.mxu0 %v628
  %1050 = vmatmul.mubr.bf16.gmra.mrb[0].mxu0 %v853
  %v1051 = vpop.f32.mrb[0].mxu0
  %v1052 = vadd.f32 %v895, %v1051
  %v1053 = vpop.f32.mrb[0].mxu0
  %v1054 = vpop.f32.mrb[0].mxu0
  %v1055 = vadd.f32 %v895, %v1054
  %v1056 = vpop.f32.mrb[0].mxu0
  %1057 = vmatprep.mubr.bf16.mxu0 %v629
  %1058 = vmatmul.mubr.bf16.gmra.mrb[0].mxu0 %v854
  %v1059 = vpop.f32.mrb[0].mxu0
  %v1060 = vadd.f32 %v895, %v1059
  %v1061 = vpop.f32.mrb[0].mxu0
  %v1062 = vpop.f32.mrb[0].mxu0
  %v1063 = vadd.f32 %v895, %v1062
  %v1064 = vpop.f32.mrb[0].mxu0
  %1065 = vmatprep.mubr.bf16.mxu0 %v630
  %1066 = vmatmul.mubr.bf16.gmra.mrb[0].mxu0 %v855
  %v1067 = vpop.f32.mrb[0].mxu0
  %v1068 = vadd.f32 %v895, %v1067
  %v1069 = vpop.f32.mrb[0].mxu0
  %v1070 = vpop.f32.mrb[0].mxu0
  %v1071 = vadd.f32 %v895, %v1070
  %v1072 = vpop.f32.mrb[0].mxu0
  %1073 = vmatprep.mubr.bf16.mxu0 %v631
  %1074 = vmatmul.mubr.bf16.gmra.mrb[0].mxu0 %v856
  %v1075 = vpop.f32.mrb[0].mxu0
  %v1076 = vadd.f32 %v895, %v1075
  %v1077 = vpop.f32.mrb[0].mxu0
  %v1078 = vpop.f32.mrb[0].mxu0
  %v1079 = vadd.f32 %v895, %v1078
  %v1080 = vpop.f32.mrb[0].mxu0
  %1081 = vmatprep.mubr.bf16.mxu0 %v632
  %1082 = vmatmul.mubr.bf16.gmra.mrb[0].mxu0 %v857
  %v1083 = vpop.f32.mrb[0].mxu0
  %v1084 = vadd.f32 %v895, %v1083
  %v1085 = vpop.f32.mrb[0].mxu0
  %v1086 = vpop.f32.mrb[0].mxu0
  %v1087 = vadd.f32 %v895, %v1086
  %v1088 = vpop.f32.mrb[0].mxu0
  %1089 = vdwg.mxu0
  %v1090 = vmax.f32 %v1028, 0.0
  %v1091 = vmax.f32 %v1031, 0.0
  %v1092 = vmax.f32 %v1036, 0.0
  %v1093 = vmax.f32 %v1039, 0.0
  %v1094 = vmax.f32 %v1044, 0.0
  %v1095 = vmax.f32 %v1047, 0.0
  %v1096 = vmax.f32 %v1052, 0.0
  %v1097 = vmax.f32 %v1055, 0.0
  %v1098 = vmax.f32 %v1060, 0.0
  %v1099 = vmax.f32 %v1063, 0.0
  %v1100 = vmax.f32 %v1068, 0.0
  %v1101 = vmax.f32 %v1071, 0.0
  %v1102 = vmax.f32 %v1076, 0.0
  %v1103 = vmax.f32 %v1079, 0.0
  %v1104 = vmax.f32 %v1084, 0.0
  %v1105 = vmax.f32 %v1087, 0.0
  %v1106 = vpack.c.bf16 %v1091, %v1090
  %v1107 = vpack.c.bf16 %v1093, %v1092
  %v1108 = vpack.c.bf16 %v1095, %v1094
  %v1109 = vpack.c.bf16 %v1097, %v1096
  %v1110 = vpack.c.bf16 %v1099, %v1098
  %v1111 = vpack.c.bf16 %v1101, %v1100
  %v1112 = vpack.c.bf16 %v1103, %v1102
  %v1113 = vpack.c.bf16 %v1105, %v1104
  %1114 = vst [vmem:[#allocation5] sm:$0xff] %v1106
  %1115 = vst [vmem:[#allocation5 + $0x8] sm:$0xff] %v1107
  %1116 = vst [vmem:[#allocation5 + $0x10] sm:$0xff] %v1108
  %1117 = vst [vmem:[#allocation5 + $0x18] sm:$0xff] %v1109
  %1118 = vst [vmem:[#allocation5 + $0x20] sm:$0xff] %v1110
  %1119 = vst [vmem:[#allocation5 + $0x28] sm:$0xff] %v1111
  %1120 = vst [vmem:[#allocation5 + $0x30] sm:$0xff] %v1112
  %1121 = vst [vmem:[#allocation5 + $0x38] sm:$0xff] %v1113
  %s1122 = sshll.u32 %s43, 4
  %1123 = dma.done [#allocation3], %s1122
  %v1124 = vld [vmem:[#allocation5] sm:$0xff]
  %v1125 = vld [vmem:[#allocation5 + $0x8] sm:$0xff]
  %v1126 = vld [vmem:[#allocation5 + $0x10] sm:$0xff]
  %v1127 = vld [vmem:[#allocation5 + $0x18] sm:$0xff]
  %v1128 = vld [vmem:[#allocation5 + $0x20] sm:$0xff]
  %v1129 = vld [vmem:[#allocation5 + $0x28] sm:$0xff]
  %v1130 = vld [vmem:[#allocation5 + $0x30] sm:$0xff]
  %v1131 = vld [vmem:[#allocation5 + $0x38] sm:$0xff]
  %v1132 = vld [vmem:[#allocation2] sm:$0xff]
  %v1133 = vld [vmem:[#allocation2 + $0x8] sm:$0xff]
  %v1134 = vld [vmem:[#allocation2 + $0x10] sm:$0xff]
  %v1135 = vld [vmem:[#allocation2 + $0x18] sm:$0xff]
  %v1136 = vld [vmem:[#allocation2 + $0x20] sm:$0xff]
  %v1137 = vld [vmem:[#allocation2 + $0x28] sm:$0xff]
  %v1138 = vld [vmem:[#allocation2 + $0x30] sm:$0xff]
  %v1139 = vld [vmem:[#allocation2 + $0x38] sm:$0xff]
  %1140 = vmatprep.subr.bf16.mxu0 0
  %1141 = vmatpush1.bf16.msra.mxu0 %v1124
  %1142 = vmatprep.subr.bf16.mxu0 0
  %1143 = vmatpush1.bf16.msra.mxu0 %v1125
  %1144 = vmatprep.subr.bf16.mxu0 0
  %1145 = vmatpush1.bf16.msra.mxu0 %v1126
  %1146 = vmatprep.subr.bf16.mxu0 0
  %1147 = vmatpush1.bf16.msra.mxu0 %v1127
  %1148 = vmatprep.subr.bf16.mxu0 0
  %1149 = vmatpush1.bf16.msra.mxu0 %v1128
  %1150 = vmatprep.subr.bf16.mxu0 0
  %1151 = vmatpush1.bf16.msra.mxu0 %v1129
  %1152 = vmatprep.subr.bf16.mxu0 0
  %1153 = vmatpush1.bf16.msra.mxu0 %v1130
  %1154 = vmatprep.subr.bf16.mxu0 0
  %1155 = vmatpush1.bf16.msra.mxu0 %v1131
  %1156 = vmatprep.subr.bf16.mxu0 0
  %1157 = vmatpush1.bf16.msra.mxu0 0
  %1158 = vmatprep.subr.bf16.mxu0 0
  %1159 = vmatpush1.bf16.msra.mxu0 0
  %1160 = vmatprep.subr.bf16.mxu0 0
  %1161 = vmatpush1.bf16.msra.mxu0 0
  %1162 = vmatprep.subr.bf16.mxu0 0
  %1163 = vmatpush1.bf16.msra.mxu0 0
  %1164 = vmatprep.subr.bf16.mxu0 0
  %1165 = vmatpush1.bf16.msra.mxu0 0
  %1166 = vmatprep.subr.bf16.mxu0 0
  %1167 = vmatpush1.bf16.msra.mxu0 0
  %1168 = vmatprep.subr.bf16.mxu0 0
  %1169 = vmatpush1.bf16.msra.mxu0 0
  %1170 = vmatprep.subr.bf16.mxu0 0
  %1171 = vmatpush1.bf16.msra.mxu0 0
  %1172 = vmatprep.mubr.bf16.mxu0 0
  %1173 = vmatmul.mubr.bf16.gmra.mrb[0].mxu0 %v1132
  %v1174 = vpop.f32.mrb[0].mxu0
  %v1175 = vadd.f32 0.0, %v1174
  %v1176 = vpop.f32.mrb[0].mxu0
  %v1177 = vpop.f32.mrb[0].mxu0
  %v1178 = vadd.f32 0.0, %v1177
  %v1179 = vpop.f32.mrb[0].mxu0
  %1180 = vmatprep.mubr.bf16.mxu0 0
  %1181 = vmatmul.mubr.bf16.gmra.mrb[0].mxu0 %v1133
  %v1182 = vpop.f32.mrb[0].mxu0
  %v1183 = vadd.f32 0.0, %v1182
  %v1184 = vpop.f32.mrb[0].mxu0
  %v1185 = vpop.f32.mrb[0].mxu0
  %v1186 = vadd.f32 0.0, %v1185
  %v1187 = vpop.f32.mrb[0].mxu0
  %1188 = vmatprep.mubr.bf16.mxu0 0
  %1189 = vmatmul.mubr.bf16.gmra.mrb[0].mxu0 %v1134
  %v1190 = vpop.f32.mrb[0].mxu0
  %v1191 = vadd.f32 0.0, %v1190
  %v1192 = vpop.f32.mrb[0].mxu0
  %v1193 = vpop.f32.mrb[0].mxu0
  %v1194 = vadd.f32 0.0, %v1193
  %v1195 = vpop.f32.mrb[0].mxu0
  %1196 = vmatprep.mubr.bf16.mxu0 0
  %1197 = vmatmul.mubr.bf16.gmra.mrb[0].mxu0 %v1135
  %v1198 = vpop.f32.mrb[0].mxu0
  %v1199 = vadd.f32 0.0, %v1198
  %v1200 = vpop.f32.mrb[0].mxu0
  %v1201 = vpop.f32.mrb[0].mxu0
  %v1202 = vadd.f32 0.0, %v1201
  %v1203 = vpop.f32.mrb[0].mxu0
  %1204 = vmatprep.mubr.bf16.mxu0 0
  %1205 = vmatmul.mubr.bf16.gmra.mrb[0].mxu0 %v1136
  %v1206 = vpop.f32.mrb[0].mxu0
  %v1207 = vadd.f32 0.0, %v1206
  %v1208 = vpop.f32.mrb[0].mxu0
  %v1209 = vpop.f32.mrb[0].mxu0
  %v1210 = vadd.f32 0.0, %v1209
  %v1211 = vpop.f32.mrb[0].mxu0
  %1212 = vmatprep.mubr.bf16.mxu0 0
  %1213 = vmatmul.mubr.bf16.gmra.mrb[0].mxu0 %v1137
  %v1214 = vpop.f32.mrb[0].mxu0
  %v1215 = vadd.f32 0.0, %v1214
  %v1216 = vpop.f32.mrb[0].mxu0
  %v1217 = vpop.f32.mrb[0].mxu0
  %v1218 = vadd.f32 0.0, %v1217
  %v1219 = vpop.f32.mrb[0].mxu0
  %1220 = vmatprep.mubr.bf16.mxu0 0
  %1221 = vmatmul.mubr.bf16.gmra.mrb[0].mxu0 %v1138
  %v1222 = vpop.f32.mrb[0].mxu0
  %v1223 = vadd.f32 0.0, %v1222
  %v1224 = vpop.f32.mrb[0].mxu0
  %v1225 = vpop.f32.mrb[0].mxu0
  %v1226 = vadd.f32 0.0, %v1225
  %v1227 = vpop.f32.mrb[0].mxu0
  %1228 = vmatprep.mubr.bf16.mxu0 0
  %1229 = vmatmul.mubr.bf16.gmra.mrb[0].mxu0 %v1139
  %v1230 = vpop.f32.mrb[0].mxu0
  %v1231 = vadd.f32 0.0, %v1230
  %v1232 = vpop.f32.mrb[0].mxu0
  %v1233 = vpop.f32.mrb[0].mxu0
  %v1234 = vadd.f32 0.0, %v1233
  %v1235 = vpop.f32.mrb[0].mxu0
  %1236 = vdwg.mxu0
  %v1237 = vld [vmem:[%s1] sm:$0xff]
  %v1238 = vld [vmem:[%s1 + $0x8] sm:$0xff]
  %v1239 = vld [vmem:[%s1 + $0x10] sm:$0xff]
  %v1240 = vld [vmem:[%s1 + $0x18] sm:$0xff]
  %v1241 = vld [vmem:[%s1 + $0x20] sm:$0xff]
  %v1242 = vld [vmem:[%s1 + $0x28] sm:$0xff]
  %v1243 = vld [vmem:[%s1 + $0x30] sm:$0xff]
  %v1244 = vld [vmem:[%s1 + $0x38] sm:$0xff]
  %v1245 = vld [vmem:[%s1 + $0x40] sm:$0xff]
  %v1246 = vld [vmem:[%s1 + $0x48] sm:$0xff]
  %v1247 = vld [vmem:[%s1 + $0x50] sm:$0xff]
  %v1248 = vld [vmem:[%s1 + $0x58] sm:$0xff]
  %v1249 = vld [vmem:[%s1 + $0x60] sm:$0xff]
  %v1250 = vld [vmem:[%s1 + $0x68] sm:$0xff]
  %v1251 = vld [vmem:[%s1 + $0x70] sm:$0xff]
  %v1252 = vld [vmem:[%s1 + $0x78] sm:$0xff]
  %1254 = vset.pattern.permute.xlu0 0
  %1255 = vperm.xlu0 %1254, %v1237
  %v1256 = vpop.permute.xlu0 %1255
  %1259 = vset.pattern.permute.xlu0 0
  %1260 = vperm.xlu0 %1259, %v1238
  %v1261 = vpop.permute.xlu0 %1260
  %1264 = vset.pattern.permute.xlu0 0
  %1265 = vperm.xlu0 %1264, %v1239
  %v1266 = vpop.permute.xlu0 %1265
  %1269 = vset.pattern.permute.xlu0 0
  %1270 = vperm.xlu0 %1269, %v1240
  %v1271 = vpop.permute.xlu0 %1270
  %1274 = vset.pattern.permute.xlu0 0
  %1275 = vperm.xlu0 %1274, %v1241
  %v1276 = vpop.permute.xlu0 %1275
  %1279 = vset.pattern.permute.xlu0 0
  %1280 = vperm.xlu0 %1279, %v1242
  %v1281 = vpop.permute.xlu0 %1280
  %1284 = vset.pattern.permute.xlu0 0
  %1285 = vperm.xlu0 %1284, %v1243
  %v1286 = vpop.permute.xlu0 %1285
  %1289 = vset.pattern.permute.xlu0 0
  %1290 = vperm.xlu0 %1289, %v1244
  %v1291 = vpop.permute.xlu0 %1290
  %1294 = vset.pattern.permute.xlu0 0
  %1295 = vperm.xlu0 %1294, %v1245
  %v1296 = vpop.permute.xlu0 %1295
  %1299 = vset.pattern.permute.xlu0 0
  %1300 = vperm.xlu0 %1299, %v1246
  %v1301 = vpop.permute.xlu0 %1300
  %1304 = vset.pattern.permute.xlu0 0
  %1305 = vperm.xlu0 %1304, %v1247
  %v1306 = vpop.permute.xlu0 %1305
  %1309 = vset.pattern.permute.xlu0 0
  %1310 = vperm.xlu0 %1309, %v1248
  %v1311 = vpop.permute.xlu0 %1310
  %1314 = vset.pattern.permute.xlu0 0
  %1315 = vperm.xlu0 %1314, %v1249
  %v1316 = vpop.permute.xlu0 %1315
  %1319 = vset.pattern.permute.xlu0 0
  %1320 = vperm.xlu0 %1319, %v1250
  %v1321 = vpop.permute.xlu0 %1320
  %1324 = vset.pattern.permute.xlu0 0
  %1325 = vperm.xlu0 %1324, %v1251
  %v1326 = vpop.permute.xlu0 %1325
  %1329 = vset.pattern.permute.xlu0 0
  %1330 = vperm.xlu0 %1329, %v1252
  %v1331 = vpop.permute.xlu0 %1330
  %v1333 = vmul.f32 %v1175, %v1256
  %v1334 = vmul.f32 %v1178, %v1261
  %v1335 = vmul.f32 %v1183, %v1266
  %v1336 = vmul.f32 %v1186, %v1271
  %v1337 = vmul.f32 %v1191, %v1276
  %v1338 = vmul.f32 %v1194, %v1281
  %v1339 = vmul.f32 %v1199, %v1286
  %v1340 = vmul.f32 %v1202, %v1291
  %v1341 = vmul.f32 %v1207, %v1296
  %v1342 = vmul.f32 %v1210, %v1301
  %v1343 = vmul.f32 %v1215, %v1306
  %v1344 = vmul.f32 %v1218, %v1311
  %v1345 = vmul.f32 %v1223, %v1316
  %v1346 = vmul.f32 %v1226, %v1321
  %v1347 = vmul.f32 %v1231, %v1326
  %v1348 = vmul.f32 %v1234, %v1331
  %v1349 = vpack.c.bf16 %v1334, %v1333
  %v1350 = vpack.c.bf16 %v1336, %v1335
  %v1351 = vpack.c.bf16 %v1338, %v1337
  %v1352 = vpack.c.bf16 %v1340, %v1339
  %v1353 = vpack.c.bf16 %v1342, %v1341
  %v1354 = vpack.c.bf16 %v1344, %v1343
  %v1355 = vpack.c.bf16 %v1346, %v1345
  %v1356 = vpack.c.bf16 %v1348, %v1347
  %v1357 = vld [vmem:[%s6] sm:$0xf]
  %v1358 = vld [vmem:[%s6 + $0x4] sm:$0xf]
  %v1359 = vld [vmem:[%s6 + $0x8] sm:$0xf]
  %v1360 = vld [vmem:[%s6 + $0xc] sm:$0xf]
  %v1361 = vld [vmem:[%s6 + $0x10] sm:$0xf]
  %v1362 = vld [vmem:[%s6 + $0x14] sm:$0xf]
  %v1363 = vld [vmem:[%s6 + $0x18] sm:$0xf]
  %v1364 = vld [vmem:[%s6 + $0x1c] sm:$0xf]
  %v1365 = vld [vmem:[%s6 + $0x20] sm:$0xf]
  %v1366 = vld [vmem:[%s6 + $0x24] sm:$0xf]
  %v1367 = vld [vmem:[%s6 + $0x28] sm:$0xf]
  %v1368 = vld [vmem:[%s6 + $0x2c] sm:$0xf]
  %v1369 = vld [vmem:[%s6 + $0x30] sm:$0xf]
  %v1370 = vld [vmem:[%s6 + $0x34] sm:$0xf]
  %v1371 = vld [vmem:[%s6 + $0x38] sm:$0xf]
  %v1372 = vld [vmem:[%s6 + $0x3c] sm:$0xf]
  %v1373 = vld [vmem:[%s6 + $0x40] sm:$0xf]
  %v1374 = vld [vmem:[%s6 + $0x44] sm:$0xf]
  %v1375 = vld [vmem:[%s6 + $0x48] sm:$0xf]
  %v1376 = vld [vmem:[%s6 + $0x4c] sm:$0xf]
  %v1377 = vld [vmem:[%s6 + $0x50] sm:$0xf]
  %v1378 = vld [vmem:[%s6 + $0x54] sm:$0xf]
  %v1379 = vld [vmem:[%s6 + $0x58] sm:$0xf]
  %v1380 = vld [vmem:[%s6 + $0x5c] sm:$0xf]
  %v1381 = vld [vmem:[%s6 + $0x60] sm:$0xf]
  %v1382 = vld [vmem:[%s6 + $0x64] sm:$0xf]
  %v1383 = vld [vmem:[%s6 + $0x68] sm:$0xf]
  %v1384 = vld [vmem:[%s6 + $0x6c] sm:$0xf]
  %v1385 = vld [vmem:[%s6 + $0x70] sm:$0xf]
  %v1386 = vld [vmem:[%s6 + $0x74] sm:$0xf]
  %v1387 = vld [vmem:[%s6 + $0x78] sm:$0xf]
  %v1388 = vld [vmem:[%s6 + $0x7c] sm:$0xf]
  %v1389 = vld [vmem:[%s7] sm:$0x1]
  %v1391 = vlaneseq
  %v1392 = vshrl.u32 %v1391, 7
  %v1393 = vsub.s32 0, %v1392
  %v1394 = vrot.slane %v1389, %v1393
  %v1428 = vunpack.c.l.b16 %v1357
  %v1429 = vunpack.c.l.b16 %v1358
  %v1430 = vunpack.c.l.b16 %v1359
  %v1431 = vunpack.c.l.b16 %v1360
  %v1432 = vunpack.c.l.b16 %v1361
  %v1433 = vunpack.c.l.b16 %v1362
  %v1434 = vunpack.c.l.b16 %v1363
  %v1435 = vunpack.c.l.b16 %v1364
  %v1436 = vunpack.c.l.b16 %v1365
  %v1437 = vunpack.c.l.b16 %v1366
  %v1438 = vunpack.c.l.b16 %v1367
  %v1439 = vunpack.c.l.b16 %v1368
  %v1440 = vunpack.c.l.b16 %v1369
  %v1441 = vunpack.c.l.b16 %v1370
  %v1442 = vunpack.c.l.b16 %v1371
  %v1443 = vunpack.c.l.b16 %v1372
  %v1444 = vunpack.c.l.b16 %v1373
  %v1445 = vunpack.c.l.b16 %v1374
  %v1446 = vunpack.c.l.b16 %v1375
  %v1447 = vunpack.c.l.b16 %v1376
  %v1448 = vunpack.c.l.b16 %v1377
  %v1449 = vunpack.c.l.b16 %v1378
  %v1450 = vunpack.c.l.b16 %v1379
  %v1451 = vunpack.c.l.b16 %v1380
  %v1452 = vunpack.c.l.b16 %v1381
  %v1453 = vunpack.c.l.b16 %v1382
  %v1454 = vunpack.c.l.b16 %v1383
  %v1455 = vunpack.c.l.b16 %v1384
  %v1456 = vunpack.c.l.b16 %v1385
  %v1457 = vunpack.c.l.b16 %v1386
  %v1458 = vunpack.c.l.b16 %v1387
  %v1459 = vunpack.c.l.b16 %v1388
  %v1460 = vpack.c.b16 %v1429, %v1428
  %v1461 = vpack.c.b16 %v1431, %v1430
  %v1462 = vpack.c.b16 %v1433, %v1432
  %v1463 = vpack.c.b16 %v1435, %v1434
  %v1464 = vpack.c.b16 %v1437, %v1436
  %v1465 = vpack.c.b16 %v1439, %v1438
  %v1466 = vpack.c.b16 %v1441, %v1440
  %v1467 = vpack.c.b16 %v1443, %v1442
  %v1468 = vpack.c.b16 %v1445, %v1444
  %v1469 = vpack.c.b16 %v1447, %v1446
  %v1470 = vpack.c.b16 %v1449, %v1448
  %v1471 = vpack.c.b16 %v1451, %v1450
  %v1472 = vpack.c.b16 %v1453, %v1452
  %v1473 = vpack.c.b16 %v1455, %v1454
  %v1474 = vpack.c.b16 %v1457, %v1456
  %v1475 = vpack.c.b16 %v1459, %v1458
  %1492 = vmatprep.subr.bf16.mxu0 0
  %1493 = vmatpush1.bf16.msra.mxu0 %v1460
  %1494 = vmatprep.subr.bf16.mxu0 0
  %1495 = vmatpush1.bf16.msra.mxu0 %v1461
  %1496 = vmatprep.subr.bf16.mxu0 0
  %1497 = vmatpush1.bf16.msra.mxu0 %v1462
  %1498 = vmatprep.subr.bf16.mxu0 0
  %1499 = vmatpush1.bf16.msra.mxu0 %v1463
  %1500 = vmatprep.subr.bf16.mxu0 0
  %1501 = vmatpush1.bf16.msra.mxu0 %v1464
  %1502 = vmatprep.subr.bf16.mxu0 0
  %1503 = vmatpush1.bf16.msra.mxu0 %v1465
  %1504 = vmatprep.subr.bf16.mxu0 0
  %1505 = vmatpush1.bf16.msra.mxu0 %v1466
  %1506 = vmatprep.subr.bf16.mxu0 0
  %1507 = vmatpush1.bf16.msra.mxu0 %v1467
  %1508 = vmatprep.subr.bf16.mxu0 0
  %1509 = vmatpush1.bf16.msra.mxu0 %v1468
  %1510 = vmatprep.subr.bf16.mxu0 0
  %1511 = vmatpush1.bf16.msra.mxu0 %v1469
  %1512 = vmatprep.subr.bf16.mxu0 0
  %1513 = vmatpush1.bf16.msra.mxu0 %v1470
  %1514 = vmatprep.subr.bf16.mxu0 0
  %1515 = vmatpush1.bf16.msra.mxu0 %v1471
  %1516 = vmatprep.subr.bf16.mxu0 0
  %1517 = vmatpush1.bf16.msra.mxu0 %v1472
  %1518 = vmatprep.subr.bf16.mxu0 0
  %1519 = vmatpush1.bf16.msra.mxu0 %v1473
  %1520 = vmatprep.subr.bf16.mxu0 0
  %1521 = vmatpush1.bf16.msra.mxu0 %v1474
  %1522 = vmatprep.subr.bf16.mxu0 0
  %1523 = vmatpush1.bf16.msra.mxu0 %v1475
  %1524 = vmatprep.mubr.bf16.mxu0 %v1124
  %1525 = vmatmul.mubr.bf16.gmra.mrb[0].mxu0 %v1349
  %v1526 = vpop.f32.mrb[0].mxu0
  %v1527 = vadd.f32 %v1394, %v1526
  %v1528 = vpop.f32.mrb[0].mxu0
  %v1529 = vpop.f32.mrb[0].mxu0
  %v1530 = vadd.f32 %v1394, %v1529
  %v1531 = vpop.f32.mrb[0].mxu0
  %1532 = vmatprep.mubr.bf16.mxu0 %v1125
  %1533 = vmatmul.mubr.bf16.gmra.mrb[0].mxu0 %v1350
  %v1534 = vpop.f32.mrb[0].mxu0
  %v1535 = vadd.f32 %v1394, %v1534
  %v1536 = vpop.f32.mrb[0].mxu0
  %v1537 = vpop.f32.mrb[0].mxu0
  %v1538 = vadd.f32 %v1394, %v1537
  %v1539 = vpop.f32.mrb[0].mxu0
  %1540 = vmatprep.mubr.bf16.mxu0 %v1126
  %1541 = vmatmul.mubr.bf16.gmra.mrb[0].mxu0 %v1351
  %v1542 = vpop.f32.mrb[0].mxu0
  %v1543 = vadd.f32 %v1394, %v1542
  %v1544 = vpop.f32.mrb[0].mxu0
  %v1545 = vpop.f32.mrb[0].mxu0
  %v1546 = vadd.f32 %v1394, %v1545
  %v1547 = vpop.f32.mrb[0].mxu0
  %1548 = vmatprep.mubr.bf16.mxu0 %v1127
  %1549 = vmatmul.mubr.bf16.gmra.mrb[0].mxu0 %v1352
  %v1550 = vpop.f32.mrb[0].mxu0
  %v1551 = vadd.f32 %v1394, %v1550
  %v1552 = vpop.f32.mrb[0].mxu0
  %v1553 = vpop.f32.mrb[0].mxu0
  %v1554 = vadd.f32 %v1394, %v1553
  %v1555 = vpop.f32.mrb[0].mxu0
  %1556 = vmatprep.mubr.bf16.mxu0 %v1128
  %1557 = vmatmul.mubr.bf16.gmra.mrb[0].mxu0 %v1353
  %v1558 = vpop.f32.mrb[0].mxu0
  %v1559 = vadd.f32 %v1394, %v1558
  %v1560 = vpop.f32.mrb[0].mxu0
  %v1561 = vpop.f32.mrb[0].mxu0
  %v1562 = vadd.f32 %v1394, %v1561
  %v1563 = vpop.f32.mrb[0].mxu0
  %1564 = vmatprep.mubr.bf16.mxu0 %v1129
  %1565 = vmatmul.mubr.bf16.gmra.mrb[0].mxu0 %v1354
  %v1566 = vpop.f32.mrb[0].mxu0
  %v1567 = vadd.f32 %v1394, %v1566
  %v1568 = vpop.f32.mrb[0].mxu0
  %v1569 = vpop.f32.mrb[0].mxu0
  %v1570 = vadd.f32 %v1394, %v1569
  %v1571 = vpop.f32.mrb[0].mxu0
  %1572 = vmatprep.mubr.bf16.mxu0 %v1130
  %1573 = vmatmul.mubr.bf16.gmra.mrb[0].mxu0 %v1355
  %v1574 = vpop.f32.mrb[0].mxu0
  %v1575 = vadd.f32 %v1394, %v1574
  %v1576 = vpop.f32.mrb[0].mxu0
  %v1577 = vpop.f32.mrb[0].mxu0
  %v1578 = vadd.f32 %v1394, %v1577
  %v1579 = vpop.f32.mrb[0].mxu0
  %1580 = vmatprep.mubr.bf16.mxu0 %v1131
  %1581 = vmatmul.mubr.bf16.gmra.mrb[0].mxu0 %v1356
  %v1582 = vpop.f32.mrb[0].mxu0
  %v1583 = vadd.f32 %v1394, %v1582
  %v1584 = vpop.f32.mrb[0].mxu0
  %v1585 = vpop.f32.mrb[0].mxu0
  %v1586 = vadd.f32 %v1394, %v1585
  %v1587 = vpop.f32.mrb[0].mxu0
  %1588 = vdwg.mxu0
  %1589 = vmax.xlane.f32.xlu0 %v1527
  %v1590 = vpop.xlane.xlu0 %1589
  %1591 = vmax.xlane.f32.xlu0 %v1530
  %v1592 = vpop.xlane.xlu0 %1591
  %1593 = vmax.xlane.f32.xlu0 %v1535
  %v1594 = vpop.xlane.xlu0 %1593
  %1595 = vmax.xlane.f32.xlu0 %v1538
  %v1596 = vpop.xlane.xlu0 %1595
  %1597 = vmax.xlane.f32.xlu0 %v1543
  %v1598 = vpop.xlane.xlu0 %1597
  %1599 = vmax.xlane.f32.xlu0 %v1546
  %v1600 = vpop.xlane.xlu0 %1599
  %1601 = vmax.xlane.f32.xlu0 %v1551
  %v1602 = vpop.xlane.xlu0 %1601
  %1603 = vmax.xlane.f32.xlu0 %v1554
  %v1604 = vpop.xlane.xlu0 %1603
  %1605 = vmax.xlane.f32.xlu0 %v1559
  %v1606 = vpop.xlane.xlu0 %1605
  %1607 = vmax.xlane.f32.xlu0 %v1562
  %v1608 = vpop.xlane.xlu0 %1607
  %1609 = vmax.xlane.f32.xlu0 %v1567
  %v1610 = vpop.xlane.xlu0 %1609
  %1611 = vmax.xlane.f32.xlu0 %v1570
  %v1612 = vpop.xlane.xlu0 %1611
  %1613 = vmax.xlane.f32.xlu0 %v1575
  %v1614 = vpop.xlane.xlu0 %1613
  %1615 = vmax.xlane.f32.xlu0 %v1578
  %v1616 = vpop.xlane.xlu0 %1615
  %1617 = vmax.xlane.f32.xlu0 %v1583
  %v1618 = vpop.xlane.xlu0 %1617
  %1619 = vmax.xlane.f32.xlu0 %v1586
  %v1620 = vpop.xlane.xlu0 %1619
  %v1621 = vsub.f32 %v1527, %v1590
  %v1622 = vsub.f32 %v1530, %v1592
  %v1623 = vsub.f32 %v1535, %v1594
  %v1624 = vsub.f32 %v1538, %v1596
  %v1625 = vsub.f32 %v1543, %v1598
  %v1626 = vsub.f32 %v1546, %v1600
  %v1627 = vsub.f32 %v1551, %v1602
  %v1628 = vsub.f32 %v1554, %v1604
  %v1629 = vsub.f32 %v1559, %v1606
  %v1630 = vsub.f32 %v1562, %v1608
  %v1631 = vsub.f32 %v1567, %v1610
  %v1632 = vsub.f32 %v1570, %v1612
  %v1633 = vsub.f32 %v1575, %v1614
  %v1634 = vsub.f32 %v1578, %v1616
  %v1635 = vsub.f32 %v1583, %v1618
  %v1636 = vsub.f32 %v1586, %v1620
  %v1637 = vmul.f32 %v1621, 1.442695
  %v1638 = vpow.pop %v1637
  %v1639 = vmul.f32 %v1622, 1.442695
  %v1640 = vpow.pop %v1639
  %v1641 = vmul.f32 %v1623, 1.442695
  %v1642 = vpow.pop %v1641
  %v1643 = vmul.f32 %v1624, 1.442695
  %v1644 = vpow.pop %v1643
  %v1645 = vmul.f32 %v1625, 1.442695
  %v1646 = vpow.pop %v1645
  %v1647 = vmul.f32 %v1626, 1.442695
  %v1648 = vpow.pop %v1647
  %v1649 = vmul.f32 %v1627, 1.442695
  %v1650 = vpow.pop %v1649
  %v1651 = vmul.f32 %v1628, 1.442695
  %v1652 = vpow.pop %v1651
  %v1653 = vmul.f32 %v1629, 1.442695
  %v1654 = vpow.pop %v1653
  %v1655 = vmul.f32 %v1630, 1.442695
  %v1656 = vpow.pop %v1655
  %v1657 = vmul.f32 %v1631, 1.442695
  %v1658 = vpow.pop %v1657
  %v1659 = vmul.f32 %v1632, 1.442695
  %v1660 = vpow.pop %v1659
  %v1661 = vmul.f32 %v1633, 1.442695
  %v1662 = vpow.pop %v1661
  %v1663 = vmul.f32 %v1634, 1.442695
  %v1664 = vpow.pop %v1663
  %v1665 = vmul.f32 %v1635, 1.442695
  %v1666 = vpow.pop %v1665
  %v1667 = vmul.f32 %v1636, 1.442695
  %v1668 = vpow.pop %v1667
  %1669 = vadd.xlane.f32.xlu0 %v1638
  %v1670 = vpop.xlane.xlu0 %1669
  %1671 = vadd.xlane.f32.xlu0 %v1640
  %v1672 = vpop.xlane.xlu0 %1671
  %1673 = vadd.xlane.f32.xlu0 %v1642
  %v1674 = vpop.xlane.xlu0 %1673
  %1675 = vadd.xlane.f32.xlu0 %v1644
  %v1676 = vpop.xlane.xlu0 %1675
  %1677 = vadd.xlane.f32.xlu0 %v1646
  %v1678 = vpop.xlane.xlu0 %1677
  %1679 = vadd.xlane.f32.xlu0 %v1648
  %v1680 = vpop.xlane.xlu0 %1679
  %1681 = vadd.xlane.f32.xlu0 %v1650
  %v1682 = vpop.xlane.xlu0 %1681
  %1683 = vadd.xlane.f32.xlu0 %v1652
  %v1684 = vpop.xlane.xlu0 %1683
  %1685 = vadd.xlane.f32.xlu0 %v1654
  %v1686 = vpop.xlane.xlu0 %1685
  %1687 = vadd.xlane.f32.xlu0 %v1656
  %v1688 = vpop.xlane.xlu0 %1687
  %1689 = vadd.xlane.f32.xlu0 %v1658
  %v1690 = vpop.xlane.xlu0 %1689
  %1691 = vadd.xlane.f32.xlu0 %v1660
  %v1692 = vpop.xlane.xlu0 %1691
  %1693 = vadd.xlane.f32.xlu0 %v1662
  %v1694 = vpop.xlane.xlu0 %1693
  %1695 = vadd.xlane.f32.xlu0 %v1664
  %v1696 = vpop.xlane.xlu0 %1695
  %1697 = vadd.xlane.f32.xlu0 %v1666
  %v1698 = vpop.xlane.xlu0 %1697
  %1699 = vadd.xlane.f32.xlu0 %v1668
  %v1700 = vpop.xlane.xlu0 %1699
  %v1701 = vlog2.pop %v1670
  %v1702 = vmul.f32 %v1701, 0.6931472
  %v1703 = vlog2.pop %v1672
  %v1704 = vmul.f32 %v1703, 0.6931472
  %v1705 = vlog2.pop %v1674
  %v1706 = vmul.f32 %v1705, 0.6931472
  %v1707 = vlog2.pop %v1676
  %v1708 = vmul.f32 %v1707, 0.6931472
  %v1709 = vlog2.pop %v1678
  %v1710 = vmul.f32 %v1709, 0.6931472
  %v1711 = vlog2.pop %v1680
  %v1712 = vmul.f32 %v1711, 0.6931472
  %v1713 = vlog2.pop %v1682
  %v1714 = vmul.f32 %v1713, 0.6931472
  %v1715 = vlog2.pop %v1684
  %v1716 = vmul.f32 %v1715, 0.6931472
  %v1717 = vlog2.pop %v1686
  %v1718 = vmul.f32 %v1717, 0.6931472
  %v1719 = vlog2.pop %v1688
  %v1720 = vmul.f32 %v1719, 0.6931472
  %v1721 = vlog2.pop %v1690
  %v1722 = vmul.f32 %v1721, 0.6931472
  %v1723 = vlog2.pop %v1692
  %v1724 = vmul.f32 %v1723, 0.6931472
  %v1725 = vlog2.pop %v1694
  %v1726 = vmul.f32 %v1725, 0.6931472
  %v1727 = vlog2.pop %v1696
  %v1728 = vmul.f32 %v1727, 0.6931472
  %v1729 = vlog2.pop %v1698
  %v1730 = vmul.f32 %v1729, 0.6931472
  %v1731 = vlog2.pop %v1700
  %v1732 = vmul.f32 %v1731, 0.6931472
  %v1733 = vsub.f32 %v1621, %v1702
  %v1734 = vsub.f32 %v1622, %v1704
  %v1735 = vsub.f32 %v1623, %v1706
  %v1736 = vsub.f32 %v1624, %v1708
  %v1737 = vsub.f32 %v1625, %v1710
  %v1738 = vsub.f32 %v1626, %v1712
  %v1739 = vsub.f32 %v1627, %v1714
  %v1740 = vsub.f32 %v1628, %v1716
  %v1741 = vsub.f32 %v1629, %v1718
  %v1742 = vsub.f32 %v1630, %v1720
  %v1743 = vsub.f32 %v1631, %v1722
  %v1744 = vsub.f32 %v1632, %v1724
  %v1745 = vsub.f32 %v1633, %v1726
  %v1746 = vsub.f32 %v1634, %v1728
  %v1747 = vsub.f32 %v1635, %v1730
  %v1748 = vsub.f32 %v1636, %v1732
  %1749 = vst [vmem:[%s9] sm:$0xff] %v1733
  %1750 = vst [vmem:[%s9 + $0x8] sm:$0xff] %v1734
  %1751 = vst [vmem:[%s9 + $0x10] sm:$0xff] %v1735
  %1752 = vst [vmem:[%s9 + $0x18] sm:$0xff] %v1736
  %1753 = vst [vmem:[%s9 + $0x20] sm:$0xff] %v1737
  %1754 = vst [vmem:[%s9 + $0x28] sm:$0xff] %v1738
  %1755 = vst [vmem:[%s9 + $0x30] sm:$0xff] %v1739
  %1756 = vst [vmem:[%s9 + $0x38] sm:$0xff] %v1740
  %1757 = vst [vmem:[%s9 + $0x40] sm:$0xff] %v1741
  %1758 = vst [vmem:[%s9 + $0x48] sm:$0xff] %v1742
  %1759 = vst [vmem:[%s9 + $0x50] sm:$0xff] %v1743
  %1760 = vst [vmem:[%s9 + $0x58] sm:$0xff] %v1744
  %1761 = vst [vmem:[%s9 + $0x60] sm:$0xff] %v1745
  %1762 = vst [vmem:[%s9 + $0x68] sm:$0xff] %v1746
  %1763 = vst [vmem:[%s9 + $0x70] sm:$0xff] %v1747
  %1764 = vst [vmem:[%s9 + $0x78] sm:$0xff] %v1748
  // Predicated region
  $region46: #{_forward.1} parent=0 // pred_check
    _
  $region47: #{_forward.1} parent=0 // pred_check_branch
    %1766 = sbr.rel (0) target = $region49
  $region48: #{_forward.1} parent=0 // pred_region
    _
  $region49: #{_forward.1} parent=0 // pred_fallthru
    _
  // Predicated region
  $region50: #{_forward.1} parent=0 // pred_check
    _
  $region51: #{_forward.1} parent=0 // pred_check_branch
    %1768 = sbr.rel (0) target = $region53
  $region52: #{_forward.1} parent=0 // pred_region
    _
  $region53: #{_forward.1} parent=0 // pred_fallthru
    _
  %1769 = vsyncmov [#allocation3]
  %s1770 = vpop.sfrf %1769
  %p1771 = scmp.eq.s32.totalorder %s1770, 0
  %p1772 = pneg %p1771
  %1774 = shalt.err (%p1772)
  %s1775 = scalar_lea.sflag [#allocation3], 1
  %1776 = vsyncmov %s1775
  %s1777 = vpop.sfrf %1776
  %p1778 = scmp.eq.s32.totalorder %s1777, 0
  %p1779 = pneg %p1778
  %1781 = shalt.err (%p1779)

</llo_original>
